<compile_context>
chip_gen: v6e
topology: v6e:2x2x1
jax: 0.10.0
libtpu: 0.0.40
codegen_flags: <defaults>
</compile_context>

<pallas_src>
import functools

import jax
import jax.numpy as jnp
from jax import lax
from jax.experimental import pallas as pl
from jax.experimental.pallas import tpu as pltpu


# ---------------------------------------------------------------------------
# In-kernel helpers (all lane-dense: no reshapes, no strided slices)
# ---------------------------------------------------------------------------
def _shift_flat(a, k):
    """result[:, p] = a[:, p - k], zero-filled outside [0, HW).  k is a static int."""
    c, hw = a.shape
    if k == 0:
        return a
    if k > 0:
        return jnp.concatenate([jnp.zeros((c, k), a.dtype), a[:, :hw - k]], axis=1)
    return jnp.concatenate([a[:, -k:], jnp.zeros((c, -k), a.dtype)], axis=1)


def _neighbor_maps(a, width):
    """The nine zero-padded (dy, dx)-shifted copies of a flat (C, H*W) image.

    out[(dy+1)*3 + (dx+1)][:, y*width + x] = a[:, (y+dy)*width + (x+dx)] inside the image,
    0 outside (i.e. a 3x3 halo with zero padding).  Row wrap-around is suppressed with
    per-column masks; top/bottom rows are handled by the zero fill of the flat shift.
    """
    c, hw = a.shape
    col = lax.broadcasted_iota(jnp.int32, (c, hw), 1) % width   # hoisted, reused by 9 taps
    not_first = col > 0
    not_last = col < (width - 1)
    maps = []
    for dy in (-1, 0, 1):
        for dx in (-1, 0, 1):
            t = _shift_flat(a, -(dy * width + dx))
            if dx == -1:
                t = jnp.where(not_first, t, 0.0)
            elif dx == 1:
                t = jnp.where(not_last, t, 0.0)
            maps.append(t)
    return maps


# ---------------------------------------------------------------------------
# Fused conv3x3 + bias + ReLU (+ AvgPool2d(3,1,1)) kernel
# ---------------------------------------------------------------------------
def _conv3x3_stage_kernel(p_ref, w_ref, b_ref, conv_ref, *pool_refs,
                          build_patches, W, Wo, with_pool):
    """One batch element per grid step; everything lane-dense ((.., H*W) on lanes).

      p_ref   : (1, Cin,  H*W)     raw activation    (build_patches=True, stride-1 stage)
                (1, 9*Cin, Ho*Wo)  im2col patches    (build_patches=False, stride-2 stage)
      w_ref   : (Cout, 9*Cin)      weights, tap-major / channel-minor rows
      b_ref   : (Cout, 1)
      conv_ref: (1, Cout, Ho*Wo)   conv + ReLU output (input of the next stage)
      pool_refs[0] (optional): (1, Cout, Ho*Wo)  AvgPool2d(3,1,1) of the conv output
    """
    if build_patches:
        # Stride-1: build the (9*Cin, H*W) im2col operand in-register from lane shifts;
        # avoids any HBM padding / extra passes for the largest feature maps.
        patches = jnp.concatenate(_neighbor_maps(p_ref[0], W), axis=0)
    else:
        patches = p_ref[0]

    # Single big-K MXU contraction (K = 9*Cin), f32 accumulation.
    # TODO(synk): cast operands to bf16 on v6e/v7x for 2x MXU rate (keep f32 accumulation).
    acc = jnp.dot(w_ref[...], patches, preferred_element_type=jnp.float32)
    acc = jnp.maximum(acc + b_ref[...], 0.0)            # (Cout, Ho*Wo), lane-dense
    conv_ref[0] = acc

    if with_pool:
        # AvgPool2d(3, 1, 1), count_include_pad=True  ==  sum of the 9 shifted maps / 9,
        # fused here so the pooled feature never takes an extra HBM round trip.
        pool_refs[0][0] = sum(_neighbor_maps(acc, Wo)) * (1.0 / 9.0)


def _conv3x3_stage(p, w2, b2, *, n_batch, cin, cout, W, Ho, Wo,
                   build_patches, with_pool):
    """pallas_call wrapper for one backbone stage."""
    hw_out = Ho * Wo
    kernel = functools.partial(_conv3x3_stage_kernel, build_patches=build_patches,
                               W=W, Wo=Wo, with_pool=with_pool)

    in_specs = [
        pl.BlockSpec((1,) + tuple(p.shape[1:]), lambda n: (n, 0, 0)),
        pl.BlockSpec(tuple(w2.shape), lambda n: (0, 0)),
        pl.BlockSpec(tuple(b2.shape), lambda n: (0, 0)),
    ]
    out_shape = [jax.ShapeDtypeStruct((n_batch, cout, hw_out), jnp.float32)]
    out_specs = [pl.BlockSpec((1, cout, hw_out), lambda n: (n, 0, 0))]
    if with_pool:
        out_shape.append(jax.ShapeDtypeStruct((n_batch, cout, hw_out), jnp.float32))
        out_specs.append(pl.BlockSpec((1, cout, hw_out), lambda n: (n, 0, 0)))

    flops = 2 * n_batch * hw_out * (9 * cin) * cout
    if with_pool:
        flops += 10 * n_batch * cout * hw_out
    bytes_accessed = 4 * (int(p.size) + int(w2.size) + int(b2.size)
                          + n_batch * cout * hw_out * (2 if with_pool else 1))

    results = pl.pallas_call(
        kernel,
        grid=(n_batch,),
        in_specs=in_specs,
        out_specs=out_specs,
        out_shape=out_shape,
        compiler_params=pltpu.CompilerParams(
            dimension_semantics=("parallel",),
            vmem_limit_bytes=32 * 1024 * 1024),
        cost_estimate=pl.CostEstimate(flops=flops, transcendentals=0,
                                      bytes_accessed=bytes_accessed),
    )(p, w2, b2)
    if with_pool:
        return results[0], results[1]
    return results[0], None


# ---------------------------------------------------------------------------
# Wrapper-side (plain XLA) 2x2-phase im2col for stride-2 stages
# ---------------------------------------------------------------------------
def _im2col_stride2(a_flat, cin, H, W, Ho, Wo):
    """(N, Cin, H*W) -> (N, 9*Cin, Ho*Wo), tap-major / channel-minor rows.

    Done in the wrapper so the kernel never performs strided (sublane/lane-gather) slices
    (reviewer item: move stride handling out of the kernel).
    """
    n = a_flat.shape[0]
    xp = jnp.pad(a_flat.reshape(n, cin, H, W), ((0, 0), (0, 0), (1, 1), (1, 1)))
    taps = []
    for kh in range(3):
        for kw in range(3):
            win = lax.slice(xp, (0, 0, kh, kw),
                            (n, cin, kh + 2 * (Ho - 1) + 1, kw + 2 * (Wo - 1) + 1),
                            (1, 1, 2, 2))
            taps.append(win.reshape(n, cin, Ho * Wo))
    return jnp.concatenate(taps, axis=1)


# ---------------------------------------------------------------------------
# Synthetic "TimmFeatureExtractor"
# ---------------------------------------------------------------------------
class TimmFeatureExtractorPallas:
    """Synthetic multi-scale feature extractor + AvgPool2d(3,1,1) feature pooling."""

    def __init__(self, layers, in_channels=3,
                 stage_channels=(8, 8, 16, 32), stage_strides=(2, 1, 2, 2)):
        # TODO(synk): the real module loads pretrained timm weights (timm.create_model /
        # torch.hub); here the backbone is a deterministic synthetic 3x3-conv+ReLU stack.
        self.layers = list(layers)
        key = jax.random.PRNGKey(42)
        self.raw_params = []     # (w (3,3,cin,cout), b (cout,), stride)   -- reference
        self.stage_params = []   # (w2 (cout,9*cin), b2 (cout,1), stride, cin, cout) -- kernels
        cin = in_channels
        for cout, stride in zip(stage_channels, stage_strides):
            key, kw, kb = jax.random.split(key, 3)
            fan_in = 9 * cin
            w = jax.random.normal(kw, (3, 3, cin, cout), jnp.float32) * (2.0 / fan_in) ** 0.5
            b = jax.random.normal(kb, (cout,), jnp.float32) * 0.01
            self.raw_params.append((w, b, stride))
            w2 = jnp.transpose(w, (3, 0, 1, 2)).reshape(cout, 9 * cin)   # tap-major rows
            self.stage_params.append((w2, b.reshape(cout, 1), stride, cin, cout))
            cin = cout
        # stage index for each requested layer name (stem = stage 0 is never returned)
        self._layer_to_stage = {f"layer{i}": i for i in range(1, len(stage_channels))}
        self._forward = jax.jit(self._forward_impl)

    def _forward_impl(self, x_nchw):
        n, c, h, w = x_nchw.shape
        a = x_nchw.astype(jnp.float32).reshape(n, c, h * w)    # lane-dense (N, C, H*W)
        wanted = {self._layer_to_stage[name] for name in self.layers}
        pooled = {}
        for idx, (w2, b2, stride, cin, cout) in enumerate(self.stage_params):
            ho = (h - 1) // stride + 1
            wo = (w - 1) // stride + 1
            with_pool = idx in wanted
            if stride == 1:
                operand, build_patches = a, True
            else:
                assert h % 2 == 0 and w % 2 == 0
                operand, build_patches = _im2col_stride2(a, cin, h, w, ho, wo), False
            conv, pool = _conv3x3_stage(
                operand, w2, b2, n_batch=n, cin=cin, cout=cout, W=w, Ho=ho, Wo=wo,
                build_patches=build_patches, with_pool=with_pool)
            if with_pool:
                pooled[idx] = pool.reshape(n, cout, ho, wo)     # free: already NCHW order
            a, h, w = conv, ho, wo
        return {name: pooled[self._layer_to_stage[name]] for name in self.layers}

    def __call__(self, x_nchw):
        """x_nchw: (N, C, H, W) float32 -> dict[layer_name -> (N, C_l, H_l, W_l)]."""
        return self._forward(x_nchw)


# ---------------------------------------------------------------------------
# Plain-JAX reference for verification
# ---------------------------------------------------------------------------
def _ref_forward(model, x_nchw):
    a = x_nchw.astype(jnp.float32)
    outs = []
    for (w, b, stride) in model.raw_params:
        y = lax.conv_general_dilated(a, w, (stride, stride), ((1, 1), (1, 1)),
                                     dimension_numbers=("NCHW", "HWIO", "NCHW"))
        a = jnp.maximum(y + b.reshape(1, -1, 1, 1), 0.0)
        outs.append(a)
    feats = {}
    for name in model.layers:
        f = outs[model._layer_to_stage[name]]
        s = lax.reduce_window(f, 0.0, lax.add, (1, 1, 3, 3), (1, 1, 1, 1),
                              ((0, 0), (0, 0), (1, 1), (1, 1)))
        feats[name] = s / 9.0   # count_include_pad=True (PyTorch AvgPool2d default)
    return feats


# ---------------------------------------------------------------------------
if __name__ == "__main__":
    layers = ["layer1", "layer2", "layer3"]
    model = TimmFeatureExtractorPallas(layers)

    key = jax.random.PRNGKey(0)
    x = jax.random.normal(key, (2, 3, 32, 32), jnp.float32)   # NCHW, like PyTorch

    features = model(x)
    jax.block_until_ready(features)

    ref = _ref_forward(model, x)
    for name in layers:
        got, want = features[name], ref[name]
        assert got.shape == want.shape, (name, got.shape, want.shape)
        err = float(jnp.max(jnp.abs(got - want)))
        assert err < 2e-3, (name, err)

    print("KERNEL_OK")
</pallas_src>

<mosaic_0001>
module attributes {stable_mosaic.version = 11 : i64} {
  func.func @_conv3x3_stage_kernel(%arg0: i32, %arg1: memref<1x27x256xf32, #tpu.memory_space<vmem>>, %arg2: memref<8x27xf32, #tpu.memory_space<vmem>>, %arg3: memref<8x1xf32, #tpu.memory_space<vmem>>, %arg4: memref<1x8x256xf32, #tpu.memory_space<vmem>>) attributes {dimension_semantics = [#tpu.dimension_semantics<parallel>], iteration_bounds = array<i64: 2>, scalar_prefetch = 0 : i64, scratch_operands = 0 : i64, tpu.core_type = #tpu.core_type<tc>, window_params = [{transform_indices = @transform_0, window_bounds = array<i64: 1, 27, 256>}, {pipeline_mode = #tpu.pipeline_mode<synchronous>, transform_indices = @transform_1, window_bounds = array<i64: 8, 27>}, {pipeline_mode = #tpu.pipeline_mode<synchronous>, transform_indices = @transform_2, window_bounds = array<i64: 8, 1>}, {transform_indices = @transform_3, window_bounds = array<i64: 1, 8, 256>}]} {
    %c0 = arith.constant 0 : index
    %c0_0 = arith.constant 0 : index
    %c0_1 = arith.constant 0 : index
    %0 = vector.load %arg1[%c0, %c0_0, %c0_1] : memref<1x27x256xf32, #tpu.memory_space<vmem>>, vector<1x27x256xf32>
    %1 = vector.shape_cast %0 : vector<1x27x256xf32> to vector<27x256xf32>
    %c0_2 = arith.constant 0 : index
    %c0_3 = arith.constant 0 : index
    %2 = vector.load %arg2[%c0_2, %c0_3] : memref<8x27xf32, #tpu.memory_space<vmem>>, vector<8x27xf32>
    %cst = arith.constant dense<0.000000e+00> : vector<8x256xf32>
    %3 = tpu.matmul %2, %1, %cst {dimension_numbers = #tpu.dot_dimension_numbers<[1], [0], [0], [1], [0, 0, 1, 1], [], []>} : vector<8x27xf32>, vector<27x256xf32>, vector<8x256xf32> -> vector<8x256xf32>
    %c0_4 = arith.constant 0 : index
    %c0_5 = arith.constant 0 : index
    %4 = vector.load %arg3[%c0_4, %c0_5] : memref<8x1xf32, #tpu.memory_space<vmem>>, vector<8x1xf32>
    %5 = vector.broadcast %4 : vector<8x1xf32> to vector<8x256xf32>
    %6 = arith.addf %3, %5 : vector<8x256xf32>
    %cst_6 = arith.constant 0.000000e+00 : f32
    %7 = vector.broadcast %cst_6 : f32 to vector<8x256xf32>
    %8 = arith.maximumf %6, %7 : vector<8x256xf32>
    %c0_7 = arith.constant 0 : index
    %c0_8 = arith.constant 0 : index
    %c0_9 = arith.constant 0 : index
    %9 = vector.load %arg4[%c0_7, %c0_8, %c0_9] : memref<1x8x256xf32, #tpu.memory_space<vmem>>, vector<1x8x256xf32>
    %10 = vector.shape_cast %9 : vector<1x8x256xf32> to vector<8x256xf32>
    %11 = vector.shape_cast %8 : vector<8x256xf32> to vector<1x8x256xf32>
    tpu.vector_store %arg4[%c0_7, %c0_8, %c0_9], %11 {strides = array<i32>} : memref<1x8x256xf32, #tpu.memory_space<vmem>>, vector<1x8x256xf32>,
    return
  }
  func.func @transform_0(%arg0: i32) -> (i32, i32, i32) {
    %c0_i32 = arith.constant 0 : i32
    %c0_i32_0 = arith.constant 0 : i32
    %c0_i32_1 = arith.constant 0 : i32
    return %arg0, %c0_i32, %c0_i32_0 : i32, i32, i32
  }
  func.func @transform_1(%arg0: i32) -> (i32, i32) {
    %c0_i32 = arith.constant 0 : i32
    %c0_i32_0 = arith.constant 0 : i32
    %c0_i32_1 = arith.constant 0 : i32
    return %c0_i32, %c0_i32_0 : i32, i32
  }
  func.func @transform_2(%arg0: i32) -> (i32, i32) {
    %c0_i32 = arith.constant 0 : i32
    %c0_i32_0 = arith.constant 0 : i32
    %c0_i32_1 = arith.constant 0 : i32
    return %c0_i32, %c0_i32_0 : i32, i32
  }
  func.func @transform_3(%arg0: i32) -> (i32, i32, i32) {
    %c0_i32 = arith.constant 0 : i32
    %c0_i32_0 = arith.constant 0 : i32
    %c0_i32_1 = arith.constant 0 : i32
    return %arg0, %c0_i32, %c0_i32_0 : i32, i32, i32
  }
}

module attributes {stable_mosaic.version = 11 : i64} {
  func.func @_conv3x3_stage_kernel(%arg0: i32, %arg1: memref<1x8x256xf32, #tpu.memory_space<vmem>>, %arg2: memref<8x72xf32, #tpu.memory_space<vmem>>, %arg3: memref<8x1xf32, #tpu.memory_space<vmem>>, %arg4: memref<1x8x256xf32, #tpu.memory_space<vmem>>, %arg5: memref<1x8x256xf32, #tpu.memory_space<vmem>>) attributes {dimension_semantics = [#tpu.dimension_semantics<parallel>], iteration_bounds = array<i64: 2>, scalar_prefetch = 0 : i64, scratch_operands = 0 : i64, tpu.core_type = #tpu.core_type<tc>, window_params = [{transform_indices = @transform_0, window_bounds = array<i64: 1, 8, 256>}, {pipeline_mode = #tpu.pipeline_mode<synchronous>, transform_indices = @transform_1, window_bounds = array<i64: 8, 72>}, {pipeline_mode = #tpu.pipeline_mode<synchronous>, transform_indices = @transform_2, window_bounds = array<i64: 8, 1>}, {transform_indices = @transform_3, window_bounds = array<i64: 1, 8, 256>}, {transform_indices = @transform_4, window_bounds = array<i64: 1, 8, 256>}]} {
    %c0 = arith.constant 0 : index
    %c0_0 = arith.constant 0 : index
    %c0_1 = arith.constant 0 : index
    %0 = vector.load %arg1[%c0, %c0_0, %c0_1] : memref<1x8x256xf32, #tpu.memory_space<vmem>>, vector<1x8x256xf32>
    %1 = vector.shape_cast %0 : vector<1x8x256xf32> to vector<8x256xf32>
    %2 = tpu.iota {dimensions = array<i32: 1>} : vector<8x256xi32>
    %c16_i32 = arith.constant 16 : i32
    %c0_i32 = arith.constant 0 : i32
    %3 = arith.cmpi eq, %c16_i32, %c0_i32 : i32
    %c1_i32 = arith.constant 1 : i32
    %4 = arith.select %3, %c1_i32, %c16_i32 : i32
    %5 = vector.broadcast %4 : i32 to vector<8x256xi32>
    %6 = arith.remsi %2, %5 : vector<8x256xi32>
    %c0_i32_2 = arith.constant 0 : i32
    %7 = vector.broadcast %c0_i32_2 : i32 to vector<8x256xi32>
    %8 = arith.cmpi ne, %6, %7 : vector<8x256xi32>
    %c0_i32_3 = arith.constant 0 : i32
    %9 = vector.broadcast %c0_i32_3 : i32 to vector<8x256xi32>
    %10 = arith.cmpi slt, %6, %9 : vector<8x256xi32>
    %c0_i32_4 = arith.constant 0 : i32
    %11 = arith.cmpi slt, %4, %c0_i32_4 : i32
    %12 = vector.broadcast %11 : i1 to vector<8x256xi1>
    %13 = vector.broadcast %12 : vector<8x256xi1> to vector<8x256xi1>
    %14 = arith.xori %10, %13 : vector<8x256xi1>
    %15 = arith.andi %14, %8 : vector<8x256xi1>
    %16 = vector.broadcast %4 : i32 to vector<8x256xi32>
    %17 = arith.addi %6, %16 : vector<8x256xi32>
    %18 = arith.select %15, %17, %6 : vector<8x256xi1>, vector<8x256xi32>
    %c0_i32_5 = arith.constant 0 : i32
    %19 = vector.broadcast %c0_i32_5 : i32 to vector<8x256xi32>
    %20 = arith.cmpi sgt, %18, %19 : vector<8x256xi32>
    %c15_i32 = arith.constant 15 : i32
    %21 = vector.broadcast %c15_i32 : i32 to vector<8x256xi32>
    %22 = arith.cmpi slt, %18, %21 : vector<8x256xi32>
    %cst = arith.constant 0.000000e+00 : f32
    %23 = vector.broadcast %cst : f32 to vector<8x17xf32>
    %24 = vector.extract_strided_slice %1 {offsets = [0, 0], sizes = [8, 239], strides = [1, 1]} : vector<8x256xf32> to vector<8x239xf32>
    %25 = tpu.concatenate %23, %24 in 1 : vector<8x17xf32>, vector<8x239xf32> -> vector<8x256xf32>
    %cst_6 = arith.constant 0.000000e+00 : f32
    %26 = vector.broadcast %cst_6 : f32 to vector<8x256xf32>
    %27 = arith.select %20, %25, %26 : vector<8x256xi1>, vector<8x256xf32>
    %cst_7 = arith.constant 0.000000e+00 : f32
    %28 = vector.broadcast %cst_7 : f32 to vector<8x16xf32>
    %29 = vector.extract_strided_slice %1 {offsets = [0, 0], sizes = [8, 240], strides = [1, 1]} : vector<8x256xf32> to vector<8x240xf32>
    %30 = tpu.concatenate %28, %29 in 1 : vector<8x16xf32>, vector<8x240xf32> -> vector<8x256xf32>
    %cst_8 = arith.constant 0.000000e+00 : f32
    %31 = vector.broadcast %cst_8 : f32 to vector<8x15xf32>
    %32 = vector.extract_strided_slice %1 {offsets = [0, 0], sizes = [8, 241], strides = [1, 1]} : vector<8x256xf32> to vector<8x241xf32>
    %33 = tpu.concatenate %31, %32 in 1 : vector<8x15xf32>, vector<8x241xf32> -> vector<8x256xf32>
    %cst_9 = arith.constant 0.000000e+00 : f32
    %34 = vector.broadcast %cst_9 : f32 to vector<8x256xf32>
    %35 = arith.select %22, %33, %34 : vector<8x256xi1>, vector<8x256xf32>
    %cst_10 = arith.constant 0.000000e+00 : f32
    %36 = vector.broadcast %cst_10 : f32 to vector<8x1xf32>
    %37 = vector.extract_strided_slice %1 {offsets = [0, 0], sizes = [8, 255], strides = [1, 1]} : vector<8x256xf32> to vector<8x255xf32>
    %38 = tpu.concatenate %36, %37 in 1 : vector<8x1xf32>, vector<8x255xf32> -> vector<8x256xf32>
    %cst_11 = arith.constant 0.000000e+00 : f32
    %39 = vector.broadcast %cst_11 : f32 to vector<8x256xf32>
    %40 = arith.select %20, %38, %39 : vector<8x256xi1>, vector<8x256xf32>
    %41 = vector.extract_strided_slice %1 {offsets = [0, 1], sizes = [8, 255], strides = [1, 1]} : vector<8x256xf32> to vector<8x255xf32>
    %cst_12 = arith.constant 0.000000e+00 : f32
    %42 = vector.broadcast %cst_12 : f32 to vector<8x1xf32>
    %43 = tpu.concatenate %41, %42 in 1 : vector<8x255xf32>, vector<8x1xf32> -> vector<8x256xf32>
    %cst_13 = arith.constant 0.000000e+00 : f32
    %44 = vector.broadcast %cst_13 : f32 to vector<8x256xf32>
    %45 = arith.select %22, %43, %44 : vector<8x256xi1>, vector<8x256xf32>
    %46 = vector.extract_strided_slice %1 {offsets = [0, 15], sizes = [8, 241], strides = [1, 1]} : vector<8x256xf32> to vector<8x241xf32>
    %cst_14 = arith.constant 0.000000e+00 : f32
    %47 = vector.broadcast %cst_14 : f32 to vector<8x15xf32>
    %48 = tpu.concatenate %46, %47 in 1 : vector<8x241xf32>, vector<8x15xf32> -> vector<8x256xf32>
    %cst_15 = arith.constant 0.000000e+00 : f32
    %49 = vector.broadcast %cst_15 : f32 to vector<8x256xf32>
    %50 = arith.select %20, %48, %49 : vector<8x256xi1>, vector<8x256xf32>
    %51 = vector.extract_strided_slice %1 {offsets = [0, 16], sizes = [8, 240], strides = [1, 1]} : vector<8x256xf32> to vector<8x240xf32>
    %cst_16 = arith.constant 0.000000e+00 : f32
    %52 = vector.broadcast %cst_16 : f32 to vector<8x16xf32>
    %53 = tpu.concatenate %51, %52 in 1 : vector<8x240xf32>, vector<8x16xf32> -> vector<8x256xf32>
    %54 = vector.extract_strided_slice %1 {offsets = [0, 17], sizes = [8, 239], strides = [1, 1]} : vector<8x256xf32> to vector<8x239xf32>
    %cst_17 = arith.constant 0.000000e+00 : f32
    %55 = vector.broadcast %cst_17 : f32 to vector<8x17xf32>
    %56 = tpu.concatenate %54, %55 in 1 : vector<8x239xf32>, vector<8x17xf32> -> vector<8x256xf32>
    %cst_18 = arith.constant 0.000000e+00 : f32
    %57 = vector.broadcast %cst_18 : f32 to vector<8x256xf32>
    %58 = arith.select %22, %56, %57 : vector<8x256xi1>, vector<8x256xf32>
    %59 = tpu.concatenate %27, %30, %35, %40, %1, %45, %50, %53, %58 in 0 : vector<8x256xf32>, vector<8x256xf32>, vector<8x256xf32>, vector<8x256xf32>, vector<8x256xf32>, vector<8x256xf32>, vector<8x256xf32>, vector<8x256xf32>, vector<8x256xf32> -> vector<72x256xf32>
    %c0_19 = arith.constant 0 : index
    %c0_20 = arith.constant 0 : index
    %60 = vector.load %arg2[%c0_19, %c0_20] : memref<8x72xf32, #tpu.memory_space<vmem>>, vector<8x72xf32>
    %cst_21 = arith.constant dense<0.000000e+00> : vector<8x256xf32>
    %61 = tpu.matmul %60, %59, %cst_21 {dimension_numbers = #tpu.dot_dimension_numbers<[1], [0], [0], [1], [0, 0, 1, 1], [], []>} : vector<8x72xf32>, vector<72x256xf32>, vector<8x256xf32> -> vector<8x256xf32>
    %c0_22 = arith.constant 0 : index
    %c0_23 = arith.constant 0 : index
    %62 = vector.load %arg3[%c0_22, %c0_23] : memref<8x1xf32, #tpu.memory_space<vmem>>, vector<8x1xf32>
    %63 = vector.broadcast %62 : vector<8x1xf32> to vector<8x256xf32>
    %64 = arith.addf %61, %63 : vector<8x256xf32>
    %cst_24 = arith.constant 0.000000e+00 : f32
    %65 = vector.broadcast %cst_24 : f32 to vector<8x256xf32>
    %66 = arith.maximumf %64, %65 : vector<8x256xf32>
    %c0_25 = arith.constant 0 : index
    %c0_26 = arith.constant 0 : index
    %c0_27 = arith.constant 0 : index
    %67 = vector.load %arg4[%c0_25, %c0_26, %c0_27] : memref<1x8x256xf32, #tpu.memory_space<vmem>>, vector<1x8x256xf32>
    %68 = vector.shape_cast %67 : vector<1x8x256xf32> to vector<8x256xf32>
    %69 = vector.shape_cast %66 : vector<8x256xf32> to vector<1x8x256xf32>
    tpu.vector_store %arg4[%c0_25, %c0_26, %c0_27], %69 {strides = array<i32>} : memref<1x8x256xf32, #tpu.memory_space<vmem>>, vector<1x8x256xf32>,
    %70 = tpu.iota {dimensions = array<i32: 1>} : vector<8x256xi32>
    %c16_i32_28 = arith.constant 16 : i32
    %c0_i32_29 = arith.constant 0 : i32
    %71 = arith.cmpi eq, %c16_i32_28, %c0_i32_29 : i32
    %c1_i32_30 = arith.constant 1 : i32
    %72 = arith.select %71, %c1_i32_30, %c16_i32_28 : i32
    %73 = vector.broadcast %72 : i32 to vector<8x256xi32>
    %74 = arith.remsi %70, %73 : vector<8x256xi32>
    %c0_i32_31 = arith.constant 0 : i32
    %75 = vector.broadcast %c0_i32_31 : i32 to vector<8x256xi32>
    %76 = arith.cmpi ne, %74, %75 : vector<8x256xi32>
    %c0_i32_32 = arith.constant 0 : i32
    %77 = vector.broadcast %c0_i32_32 : i32 to vector<8x256xi32>
    %78 = arith.cmpi slt, %74, %77 : vector<8x256xi32>
    %c0_i32_33 = arith.constant 0 : i32
    %79 = arith.cmpi slt, %72, %c0_i32_33 : i32
    %80 = vector.broadcast %79 : i1 to vector<8x256xi1>
    %81 = vector.broadcast %80 : vector<8x256xi1> to vector<8x256xi1>
    %82 = arith.xori %78, %81 : vector<8x256xi1>
    %83 = arith.andi %82, %76 : vector<8x256xi1>
    %84 = vector.broadcast %72 : i32 to vector<8x256xi32>
    %85 = arith.addi %74, %84 : vector<8x256xi32>
    %86 = arith.select %83, %85, %74 : vector<8x256xi1>, vector<8x256xi32>
    %c0_i32_34 = arith.constant 0 : i32
    %87 = vector.broadcast %c0_i32_34 : i32 to vector<8x256xi32>
    %88 = arith.cmpi sgt, %86, %87 : vector<8x256xi32>
    %c15_i32_35 = arith.constant 15 : i32
    %89 = vector.broadcast %c15_i32_35 : i32 to vector<8x256xi32>
    %90 = arith.cmpi slt, %86, %89 : vector<8x256xi32>
    %cst_36 = arith.constant 0.000000e+00 : f32
    %91 = vector.broadcast %cst_36 : f32 to vector<8x17xf32>
    %92 = vector.extract_strided_slice %66 {offsets = [0, 0], sizes = [8, 239], strides = [1, 1]} : vector<8x256xf32> to vector<8x239xf32>
    %93 = tpu.concatenate %91, %92 in 1 : vector<8x17xf32>, vector<8x239xf32> -> vector<8x256xf32>
    %cst_37 = arith.constant 0.000000e+00 : f32
    %94 = vector.broadcast %cst_37 : f32 to vector<8x256xf32>
    %95 = arith.select %88, %93, %94 : vector<8x256xi1>, vector<8x256xf32>
    %cst_38 = arith.constant 0.000000e+00 : f32
    %96 = vector.broadcast %cst_38 : f32 to vector<8x16xf32>
    %97 = vector.extract_strided_slice %66 {offsets = [0, 0], sizes = [8, 240], strides = [1, 1]} : vector<8x256xf32> to vector<8x240xf32>
    %98 = tpu.concatenate %96, %97 in 1 : vector<8x16xf32>, vector<8x240xf32> -> vector<8x256xf32>
    %cst_39 = arith.constant 0.000000e+00 : f32
    %99 = vector.broadcast %cst_39 : f32 to vector<8x15xf32>
    %100 = vector.extract_strided_slice %66 {offsets = [0, 0], sizes = [8, 241], strides = [1, 1]} : vector<8x256xf32> to vector<8x241xf32>
    %101 = tpu.concatenate %99, %100 in 1 : vector<8x15xf32>, vector<8x241xf32> -> vector<8x256xf32>
    %cst_40 = arith.constant 0.000000e+00 : f32
    %102 = vector.broadcast %cst_40 : f32 to vector<8x256xf32>
    %103 = arith.select %90, %101, %102 : vector<8x256xi1>, vector<8x256xf32>
    %cst_41 = arith.constant 0.000000e+00 : f32
    %104 = vector.broadcast %cst_41 : f32 to vector<8x1xf32>
    %105 = vector.extract_strided_slice %66 {offsets = [0, 0], sizes = [8, 255], strides = [1, 1]} : vector<8x256xf32> to vector<8x255xf32>
    %106 = tpu.concatenate %104, %105 in 1 : vector<8x1xf32>, vector<8x255xf32> -> vector<8x256xf32>
    %cst_42 = arith.constant 0.000000e+00 : f32
    %107 = vector.broadcast %cst_42 : f32 to vector<8x256xf32>
    %108 = arith.select %88, %106, %107 : vector<8x256xi1>, vector<8x256xf32>
    %109 = vector.extract_strided_slice %66 {offsets = [0, 1], sizes = [8, 255], strides = [1, 1]} : vector<8x256xf32> to vector<8x255xf32>
    %cst_43 = arith.constant 0.000000e+00 : f32
    %110 = vector.broadcast %cst_43 : f32 to vector<8x1xf32>
    %111 = tpu.concatenate %109, %110 in 1 : vector<8x255xf32>, vector<8x1xf32> -> vector<8x256xf32>
    %cst_44 = arith.constant 0.000000e+00 : f32
    %112 = vector.broadcast %cst_44 : f32 to vector<8x256xf32>
    %113 = arith.select %90, %111, %112 : vector<8x256xi1>, vector<8x256xf32>
    %114 = vector.extract_strided_slice %66 {offsets = [0, 15], sizes = [8, 241], strides = [1, 1]} : vector<8x256xf32> to vector<8x241xf32>
    %cst_45 = arith.constant 0.000000e+00 : f32
    %115 = vector.broadcast %cst_45 : f32 to vector<8x15xf32>
    %116 = tpu.concatenate %114, %115 in 1 : vector<8x241xf32>, vector<8x15xf32> -> vector<8x256xf32>
    %cst_46 = arith.constant 0.000000e+00 : f32
    %117 = vector.broadcast %cst_46 : f32 to vector<8x256xf32>
    %118 = arith.select %88, %116, %117 : vector<8x256xi1>, vector<8x256xf32>
    %119 = vector.extract_strided_slice %66 {offsets = [0, 16], sizes = [8, 240], strides = [1, 1]} : vector<8x256xf32> to vector<8x240xf32>
    %cst_47 = arith.constant 0.000000e+00 : f32
    %120 = vector.broadcast %cst_47 : f32 to vector<8x16xf32>
    %121 = tpu.concatenate %119, %120 in 1 : vector<8x240xf32>, vector<8x16xf32> -> vector<8x256xf32>
    %122 = vector.extract_strided_slice %66 {offsets = [0, 17], sizes = [8, 239], strides = [1, 1]} : vector<8x256xf32> to vector<8x239xf32>
    %cst_48 = arith.constant 0.000000e+00 : f32
    %123 = vector.broadcast %cst_48 : f32 to vector<8x17xf32>
    %124 = tpu.concatenate %122, %123 in 1 : vector<8x239xf32>, vector<8x17xf32> -> vector<8x256xf32>
    %cst_49 = arith.constant 0.000000e+00 : f32
    %125 = vector.broadcast %cst_49 : f32 to vector<8x256xf32>
    %126 = arith.select %90, %124, %125 : vector<8x256xi1>, vector<8x256xf32>
    %cst_50 = arith.constant 0.000000e+00 : f32
    %127 = vector.broadcast %cst_50 : f32 to vector<8x256xf32>
    %128 = arith.addf %127, %95 : vector<8x256xf32>
    %129 = arith.addf %128, %98 : vector<8x256xf32>
    %130 = arith.addf %129, %103 : vector<8x256xf32>
    %131 = arith.addf %130, %108 : vector<8x256xf32>
    %132 = arith.addf %131, %66 : vector<8x256xf32>
    %133 = arith.addf %132, %113 : vector<8x256xf32>
    %134 = arith.addf %133, %118 : vector<8x256xf32>
    %135 = arith.addf %134, %121 : vector<8x256xf32>
    %136 = arith.addf %135, %126 : vector<8x256xf32>
    %cst_51 = arith.constant 0.111111112 : f32
    %137 = vector.broadcast %cst_51 : f32 to vector<8x256xf32>
    %138 = arith.mulf %136, %137 : vector<8x256xf32>
    %c0_52 = arith.constant 0 : index
    %c0_53 = arith.constant 0 : index
    %c0_54 = arith.constant 0 : index
    %139 = vector.load %arg5[%c0_52, %c0_53, %c0_54] : memref<1x8x256xf32, #tpu.memory_space<vmem>>, vector<1x8x256xf32>
    %140 = vector.shape_cast %139 : vector<1x8x256xf32> to vector<8x256xf32>
    %141 = vector.shape_cast %138 : vector<8x256xf32> to vector<1x8x256xf32>
    tpu.vector_store %arg5[%c0_52, %c0_53, %c0_54], %141 {strides = array<i32>} : memref<1x8x256xf32, #tpu.memory_space<vmem>>, vector<1x8x256xf32>,
    return
  }
  func.func @transform_0(%arg0: i32) -> (i32, i32, i32) {
    %c0_i32 = arith.constant 0 : i32
    %c0_i32_0 = arith.constant 0 : i32
    %c0_i32_1 = arith.constant 0 : i32
    return %arg0, %c0_i32, %c0_i32_0 : i32, i32, i32
  }
  func.func @transform_1(%arg0: i32) -> (i32, i32) {
    %c0_i32 = arith.constant 0 : i32
    %c0_i32_0 = arith.constant 0 : i32
    %c0_i32_1 = arith.constant 0 : i32
    return %c0_i32, %c0_i32_0 : i32, i32
  }
  func.func @transform_2(%arg0: i32) -> (i32, i32) {
    %c0_i32 = arith.constant 0 : i32
    %c0_i32_0 = arith.constant 0 : i32
    %c0_i32_1 = arith.constant 0 : i32
    return %c0_i32, %c0_i32_0 : i32, i32
  }
  func.func @transform_3(%arg0: i32) -> (i32, i32, i32) {
    %c0_i32 = arith.constant 0 : i32
    %c0_i32_0 = arith.constant 0 : i32
    %c0_i32_1 = arith.constant 0 : i32
    return %arg0, %c0_i32, %c0_i32_0 : i32, i32, i32
  }
  func.func @transform_4(%arg0: i32) -> (i32, i32, i32) {
    %c0_i32 = arith.constant 0 : i32
    %c0_i32_0 = arith.constant 0 : i32
    %c0_i32_1 = arith.constant 0 : i32
    return %arg0, %c0_i32, %c0_i32_0 : i32, i32, i32
  }
}

module attributes {stable_mosaic.version = 11 : i64} {
  func.func @_conv3x3_stage_kernel(%arg0: i32, %arg1: memref<1x72x64xf32, #tpu.memory_space<vmem>>, %arg2: memref<16x72xf32, #tpu.memory_space<vmem>>, %arg3: memref<16x1xf32, #tpu.memory_space<vmem>>, %arg4: memref<1x16x64xf32, #tpu.memory_space<vmem>>, %arg5: memref<1x16x64xf32, #tpu.memory_space<vmem>>) attributes {dimension_semantics = [#tpu.dimension_semantics<parallel>], iteration_bounds = array<i64: 2>, scalar_prefetch = 0 : i64, scratch_operands = 0 : i64, tpu.core_type = #tpu.core_type<tc>, window_params = [{transform_indices = @transform_0, window_bounds = array<i64: 1, 72, 64>}, {pipeline_mode = #tpu.pipeline_mode<synchronous>, transform_indices = @transform_1, window_bounds = array<i64: 16, 72>}, {pipeline_mode = #tpu.pipeline_mode<synchronous>, transform_indices = @transform_2, window_bounds = array<i64: 16, 1>}, {transform_indices = @transform_3, window_bounds = array<i64: 1, 16, 64>}, {transform_indices = @transform_4, window_bounds = array<i64: 1, 16, 64>}]} {
    %c0 = arith.constant 0 : index
    %c0_0 = arith.constant 0 : index
    %c0_1 = arith.constant 0 : index
    %0 = vector.load %arg1[%c0, %c0_0, %c0_1] : memref<1x72x64xf32, #tpu.memory_space<vmem>>, vector<1x72x64xf32>
    %1 = vector.shape_cast %0 : vector<1x72x64xf32> to vector<72x64xf32>
    %c0_2 = arith.constant 0 : index
    %c0_3 = arith.constant 0 : index
    %2 = vector.load %arg2[%c0_2, %c0_3] : memref<16x72xf32, #tpu.memory_space<vmem>>, vector<16x72xf32>
    %cst = arith.constant dense<0.000000e+00> : vector<16x64xf32>
    %3 = tpu.matmul %2, %1, %cst {dimension_numbers = #tpu.dot_dimension_numbers<[1], [0], [0], [1], [0, 0, 1, 1], [], []>} : vector<16x72xf32>, vector<72x64xf32>, vector<16x64xf32> -> vector<16x64xf32>
    %c0_4 = arith.constant 0 : index
    %c0_5 = arith.constant 0 : index
    %4 = vector.load %arg3[%c0_4, %c0_5] : memref<16x1xf32, #tpu.memory_space<vmem>>, vector<16x1xf32>
    %5 = vector.broadcast %4 : vector<16x1xf32> to vector<16x64xf32>
    %6 = arith.addf %3, %5 : vector<16x64xf32>
    %cst_6 = arith.constant 0.000000e+00 : f32
    %7 = vector.broadcast %cst_6 : f32 to vector<16x64xf32>
    %8 = arith.maximumf %6, %7 : vector<16x64xf32>
    %c0_7 = arith.constant 0 : index
    %c0_8 = arith.constant 0 : index
    %c0_9 = arith.constant 0 : index
    %9 = vector.load %arg4[%c0_7, %c0_8, %c0_9] : memref<1x16x64xf32, #tpu.memory_space<vmem>>, vector<1x16x64xf32>
    %10 = vector.shape_cast %9 : vector<1x16x64xf32> to vector<16x64xf32>
    %11 = vector.shape_cast %8 : vector<16x64xf32> to vector<1x16x64xf32>
    tpu.vector_store %arg4[%c0_7, %c0_8, %c0_9], %11 {strides = array<i32>} : memref<1x16x64xf32, #tpu.memory_space<vmem>>, vector<1x16x64xf32>,
    %12 = tpu.iota {dimensions = array<i32: 1>} : vector<16x64xi32>
    %c8_i32 = arith.constant 8 : i32
    %c0_i32 = arith.constant 0 : i32
    %13 = arith.cmpi eq, %c8_i32, %c0_i32 : i32
    %c1_i32 = arith.constant 1 : i32
    %14 = arith.select %13, %c1_i32, %c8_i32 : i32
    %15 = vector.broadcast %14 : i32 to vector<16x64xi32>
    %16 = arith.remsi %12, %15 : vector<16x64xi32>
    %c0_i32_10 = arith.constant 0 : i32
    %17 = vector.broadcast %c0_i32_10 : i32 to vector<16x64xi32>
    %18 = arith.cmpi ne, %16, %17 : vector<16x64xi32>
    %c0_i32_11 = arith.constant 0 : i32
    %19 = vector.broadcast %c0_i32_11 : i32 to vector<16x64xi32>
    %20 = arith.cmpi slt, %16, %19 : vector<16x64xi32>
    %c0_i32_12 = arith.constant 0 : i32
    %21 = arith.cmpi slt, %14, %c0_i32_12 : i32
    %22 = vector.broadcast %21 : i1 to vector<16x64xi1>
    %23 = vector.broadcast %22 : vector<16x64xi1> to vector<16x64xi1>
    %24 = arith.xori %20, %23 : vector<16x64xi1>
    %25 = arith.andi %24, %18 : vector<16x64xi1>
    %26 = vector.broadcast %14 : i32 to vector<16x64xi32>
    %27 = arith.addi %16, %26 : vector<16x64xi32>
    %28 = arith.select %25, %27, %16 : vector<16x64xi1>, vector<16x64xi32>
    %c0_i32_13 = arith.constant 0 : i32
    %29 = vector.broadcast %c0_i32_13 : i32 to vector<16x64xi32>
    %30 = arith.cmpi sgt, %28, %29 : vector<16x64xi32>
    %c7_i32 = arith.constant 7 : i32
    %31 = vector.broadcast %c7_i32 : i32 to vector<16x64xi32>
    %32 = arith.cmpi slt, %28, %31 : vector<16x64xi32>
    %cst_14 = arith.constant 0.000000e+00 : f32
    %33 = vector.broadcast %cst_14 : f32 to vector<16x9xf32>
    %34 = vector.extract_strided_slice %8 {offsets = [0, 0], sizes = [16, 55], strides = [1, 1]} : vector<16x64xf32> to vector<16x55xf32>
    %35 = tpu.concatenate %33, %34 in 1 : vector<16x9xf32>, vector<16x55xf32> -> vector<16x64xf32>
    %cst_15 = arith.constant 0.000000e+00 : f32
    %36 = vector.broadcast %cst_15 : f32 to vector<16x64xf32>
    %37 = arith.select %30, %35, %36 : vector<16x64xi1>, vector<16x64xf32>
    %cst_16 = arith.constant 0.000000e+00 : f32
    %38 = vector.broadcast %cst_16 : f32 to vector<16x8xf32>
    %39 = vector.extract_strided_slice %8 {offsets = [0, 0], sizes = [16, 56], strides = [1, 1]} : vector<16x64xf32> to vector<16x56xf32>
    %40 = tpu.concatenate %38, %39 in 1 : vector<16x8xf32>, vector<16x56xf32> -> vector<16x64xf32>
    %cst_17 = arith.constant 0.000000e+00 : f32
    %41 = vector.broadcast %cst_17 : f32 to vector<16x7xf32>
    %42 = vector.extract_strided_slice %8 {offsets = [0, 0], sizes = [16, 57], strides = [1, 1]} : vector<16x64xf32> to vector<16x57xf32>
    %43 = tpu.concatenate %41, %42 in 1 : vector<16x7xf32>, vector<16x57xf32> -> vector<16x64xf32>
    %cst_18 = arith.constant 0.000000e+00 : f32
    %44 = vector.broadcast %cst_18 : f32 to vector<16x64xf32>
    %45 = arith.select %32, %43, %44 : vector<16x64xi1>, vector<16x64xf32>
    %cst_19 = arith.constant 0.000000e+00 : f32
    %46 = vector.broadcast %cst_19 : f32 to vector<16x1xf32>
    %47 = vector.extract_strided_slice %8 {offsets = [0, 0], sizes = [16, 63], strides = [1, 1]} : vector<16x64xf32> to vector<16x63xf32>
    %48 = tpu.concatenate %46, %47 in 1 : vector<16x1xf32>, vector<16x63xf32> -> vector<16x64xf32>
    %cst_20 = arith.constant 0.000000e+00 : f32
    %49 = vector.broadcast %cst_20 : f32 to vector<16x64xf32>
    %50 = arith.select %30, %48, %49 : vector<16x64xi1>, vector<16x64xf32>
    %51 = vector.extract_strided_slice %8 {offsets = [0, 1], sizes = [16, 63], strides = [1, 1]} : vector<16x64xf32> to vector<16x63xf32>
    %cst_21 = arith.constant 0.000000e+00 : f32
    %52 = vector.broadcast %cst_21 : f32 to vector<16x1xf32>
    %53 = tpu.concatenate %51, %52 in 1 : vector<16x63xf32>, vector<16x1xf32> -> vector<16x64xf32>
    %cst_22 = arith.constant 0.000000e+00 : f32
    %54 = vector.broadcast %cst_22 : f32 to vector<16x64xf32>
    %55 = arith.select %32, %53, %54 : vector<16x64xi1>, vector<16x64xf32>
    %56 = vector.extract_strided_slice %8 {offsets = [0, 7], sizes = [16, 57], strides = [1, 1]} : vector<16x64xf32> to vector<16x57xf32>
    %cst_23 = arith.constant 0.000000e+00 : f32
    %57 = vector.broadcast %cst_23 : f32 to vector<16x7xf32>
    %58 = tpu.concatenate %56, %57 in 1 : vector<16x57xf32>, vector<16x7xf32> -> vector<16x64xf32>
    %cst_24 = arith.constant 0.000000e+00 : f32
    %59 = vector.broadcast %cst_24 : f32 to vector<16x64xf32>
    %60 = arith.select %30, %58, %59 : vector<16x64xi1>, vector<16x64xf32>
    %61 = vector.extract_strided_slice %8 {offsets = [0, 8], sizes = [16, 56], strides = [1, 1]} : vector<16x64xf32> to vector<16x56xf32>
    %cst_25 = arith.constant 0.000000e+00 : f32
    %62 = vector.broadcast %cst_25 : f32 to vector<16x8xf32>
    %63 = tpu.concatenate %61, %62 in 1 : vector<16x56xf32>, vector<16x8xf32> -> vector<16x64xf32>
    %64 = vector.extract_strided_slice %8 {offsets = [0, 9], sizes = [16, 55], strides = [1, 1]} : vector<16x64xf32> to vector<16x55xf32>
    %cst_26 = arith.constant 0.000000e+00 : f32
    %65 = vector.broadcast %cst_26 : f32 to vector<16x9xf32>
    %66 = tpu.concatenate %64, %65 in 1 : vector<16x55xf32>, vector<16x9xf32> -> vector<16x64xf32>
    %cst_27 = arith.constant 0.000000e+00 : f32
    %67 = vector.broadcast %cst_27 : f32 to vector<16x64xf32>
    %68 = arith.select %32, %66, %67 : vector<16x64xi1>, vector<16x64xf32>
    %cst_28 = arith.constant 0.000000e+00 : f32
    %69 = vector.broadcast %cst_28 : f32 to vector<16x64xf32>
    %70 = arith.addf %69, %37 : vector<16x64xf32>
    %71 = arith.addf %70, %40 : vector<16x64xf32>
    %72 = arith.addf %71, %45 : vector<16x64xf32>
    %73 = arith.addf %72, %50 : vector<16x64xf32>
    %74 = arith.addf %73, %8 : vector<16x64xf32>
    %75 = arith.addf %74, %55 : vector<16x64xf32>
    %76 = arith.addf %75, %60 : vector<16x64xf32>
    %77 = arith.addf %76, %63 : vector<16x64xf32>
    %78 = arith.addf %77, %68 : vector<16x64xf32>
    %cst_29 = arith.constant 0.111111112 : f32
    %79 = vector.broadcast %cst_29 : f32 to vector<16x64xf32>
    %80 = arith.mulf %78, %79 : vector<16x64xf32>
    %c0_30 = arith.constant 0 : index
    %c0_31 = arith.constant 0 : index
    %c0_32 = arith.constant 0 : index
    %81 = vector.load %arg5[%c0_30, %c0_31, %c0_32] : memref<1x16x64xf32, #tpu.memory_space<vmem>>, vector<1x16x64xf32>
    %82 = vector.shape_cast %81 : vector<1x16x64xf32> to vector<16x64xf32>
    %83 = vector.shape_cast %80 : vector<16x64xf32> to vector<1x16x64xf32>
    tpu.vector_store %arg5[%c0_30, %c0_31, %c0_32], %83 {strides = array<i32>} : memref<1x16x64xf32, #tpu.memory_space<vmem>>, vector<1x16x64xf32>,
    return
  }
  func.func @transform_0(%arg0: i32) -> (i32, i32, i32) {
    %c0_i32 = arith.constant 0 : i32
    %c0_i32_0 = arith.constant 0 : i32
    %c0_i32_1 = arith.constant 0 : i32
    return %arg0, %c0_i32, %c0_i32_0 : i32, i32, i32
  }
  func.func @transform_1(%arg0: i32) -> (i32, i32) {
    %c0_i32 = arith.constant 0 : i32
    %c0_i32_0 = arith.constant 0 : i32
    %c0_i32_1 = arith.constant 0 : i32
    return %c0_i32, %c0_i32_0 : i32, i32
  }
  func.func @transform_2(%arg0: i32) -> (i32, i32) {
    %c0_i32 = arith.constant 0 : i32
    %c0_i32_0 = arith.constant 0 : i32
    %c0_i32_1 = arith.constant 0 : i32
    return %c0_i32, %c0_i32_0 : i32, i32
  }
  func.func @transform_3(%arg0: i32) -> (i32, i32, i32) {
    %c0_i32 = arith.constant 0 : i32
    %c0_i32_0 = arith.constant 0 : i32
    %c0_i32_1 = arith.constant 0 : i32
    return %arg0, %c0_i32, %c0_i32_0 : i32, i32, i32
  }
  func.func @transform_4(%arg0: i32) -> (i32, i32, i32) {
    %c0_i32 = arith.constant 0 : i32
    %c0_i32_0 = arith.constant 0 : i32
    %c0_i32_1 = arith.constant 0 : i32
    return %arg0, %c0_i32, %c0_i32_0 : i32, i32, i32
  }
}

module attributes {stable_mosaic.version = 11 : i64} {
  func.func @_conv3x3_stage_kernel(%arg0: i32, %arg1: memref<1x144x16xf32, #tpu.memory_space<vmem>>, %arg2: memref<32x144xf32, #tpu.memory_space<vmem>>, %arg3: memref<32x1xf32, #tpu.memory_space<vmem>>, %arg4: memref<1x32x16xf32, #tpu.memory_space<vmem>>, %arg5: memref<1x32x16xf32, #tpu.memory_space<vmem>>) attributes {dimension_semantics = [#tpu.dimension_semantics<parallel>], iteration_bounds = array<i64: 2>, scalar_prefetch = 0 : i64, scratch_operands = 0 : i64, tpu.core_type = #tpu.core_type<tc>, window_params = [{transform_indices = @transform_0, window_bounds = array<i64: 1, 144, 16>}, {pipeline_mode = #tpu.pipeline_mode<synchronous>, transform_indices = @transform_1, window_bounds = array<i64: 32, 144>}, {pipeline_mode = #tpu.pipeline_mode<synchronous>, transform_indices = @transform_2, window_bounds = array<i64: 32, 1>}, {transform_indices = @transform_3, window_bounds = array<i64: 1, 32, 16>}, {transform_indices = @transform_4, window_bounds = array<i64: 1, 32, 16>}]} {
    %c0 = arith.constant 0 : index
    %c0_0 = arith.constant 0 : index
    %c0_1 = arith.constant 0 : index
    %0 = vector.load %arg1[%c0, %c0_0, %c0_1] : memref<1x144x16xf32, #tpu.memory_space<vmem>>, vector<1x144x16xf32>
    %1 = vector.shape_cast %0 : vector<1x144x16xf32> to vector<144x16xf32>
    %c0_2 = arith.constant 0 : index
    %c0_3 = arith.constant 0 : index
    %2 = vector.load %arg2[%c0_2, %c0_3] : memref<32x144xf32, #tpu.memory_space<vmem>>, vector<32x144xf32>
    %cst = arith.constant dense<0.000000e+00> : vector<32x16xf32>
    %3 = tpu.matmul %2, %1, %cst {dimension_numbers = #tpu.dot_dimension_numbers<[1], [0], [0], [1], [0, 0, 1, 1], [], []>} : vector<32x144xf32>, vector<144x16xf32>, vector<32x16xf32> -> vector<32x16xf32>
    %c0_4 = arith.constant 0 : index
    %c0_5 = arith.constant 0 : index
    %4 = vector.load %arg3[%c0_4, %c0_5] : memref<32x1xf32, #tpu.memory_space<vmem>>, vector<32x1xf32>
    %5 = vector.broadcast %4 : vector<32x1xf32> to vector<32x16xf32>
    %6 = arith.addf %3, %5 : vector<32x16xf32>
    %cst_6 = arith.constant 0.000000e+00 : f32
    %7 = vector.broadcast %cst_6 : f32 to vector<32x16xf32>
    %8 = arith.maximumf %6, %7 : vector<32x16xf32>
    %c0_7 = arith.constant 0 : index
    %c0_8 = arith.constant 0 : index
    %c0_9 = arith.constant 0 : index
    %9 = vector.load %arg4[%c0_7, %c0_8, %c0_9] : memref<1x32x16xf32, #tpu.memory_space<vmem>>, vector<1x32x16xf32>
    %10 = vector.shape_cast %9 : vector<1x32x16xf32> to vector<32x16xf32>
    %11 = vector.shape_cast %8 : vector<32x16xf32> to vector<1x32x16xf32>
    tpu.vector_store %arg4[%c0_7, %c0_8, %c0_9], %11 {strides = array<i32>} : memref<1x32x16xf32, #tpu.memory_space<vmem>>, vector<1x32x16xf32>,
    %12 = tpu.iota {dimensions = array<i32: 1>} : vector<32x16xi32>
    %c4_i32 = arith.constant 4 : i32
    %c0_i32 = arith.constant 0 : i32
    %13 = arith.cmpi eq, %c4_i32, %c0_i32 : i32
    %c1_i32 = arith.constant 1 : i32
    %14 = arith.select %13, %c1_i32, %c4_i32 : i32
    %15 = vector.broadcast %14 : i32 to vector<32x16xi32>
    %16 = arith.remsi %12, %15 : vector<32x16xi32>
    %c0_i32_10 = arith.constant 0 : i32
    %17 = vector.broadcast %c0_i32_10 : i32 to vector<32x16xi32>
    %18 = arith.cmpi ne, %16, %17 : vector<32x16xi32>
    %c0_i32_11 = arith.constant 0 : i32
    %19 = vector.broadcast %c0_i32_11 : i32 to vector<32x16xi32>
    %20 = arith.cmpi slt, %16, %19 : vector<32x16xi32>
    %c0_i32_12 = arith.constant 0 : i32
    %21 = arith.cmpi slt, %14, %c0_i32_12 : i32
    %22 = vector.broadcast %21 : i1 to vector<32x16xi1>
    %23 = vector.broadcast %22 : vector<32x16xi1> to vector<32x16xi1>
    %24 = arith.xori %20, %23 : vector<32x16xi1>
    %25 = arith.andi %24, %18 : vector<32x16xi1>
    %26 = vector.broadcast %14 : i32 to vector<32x16xi32>
    %27 = arith.addi %16, %26 : vector<32x16xi32>
    %28 = arith.select %25, %27, %16 : vector<32x16xi1>, vector<32x16xi32>
    %c0_i32_13 = arith.constant 0 : i32
    %29 = vector.broadcast %c0_i32_13 : i32 to vector<32x16xi32>
    %30 = arith.cmpi sgt, %28, %29 : vector<32x16xi32>
    %c3_i32 = arith.constant 3 : i32
    %31 = vector.broadcast %c3_i32 : i32 to vector<32x16xi32>
    %32 = arith.cmpi slt, %28, %31 : vector<32x16xi32>
    %cst_14 = arith.constant 0.000000e+00 : f32
    %33 = vector.broadcast %cst_14 : f32 to vector<32x5xf32>
    %34 = vector.extract_strided_slice %8 {offsets = [0, 0], sizes = [32, 11], strides = [1, 1]} : vector<32x16xf32> to vector<32x11xf32>
    %35 = tpu.concatenate %33, %34 in 1 : vector<32x5xf32>, vector<32x11xf32> -> vector<32x16xf32>
    %cst_15 = arith.constant 0.000000e+00 : f32
    %36 = vector.broadcast %cst_15 : f32 to vector<32x16xf32>
    %37 = arith.select %30, %35, %36 : vector<32x16xi1>, vector<32x16xf32>
    %cst_16 = arith.constant 0.000000e+00 : f32
    %38 = vector.broadcast %cst_16 : f32 to vector<32x4xf32>
    %39 = vector.extract_strided_slice %8 {offsets = [0, 0], sizes = [32, 12], strides = [1, 1]} : vector<32x16xf32> to vector<32x12xf32>
    %40 = tpu.concatenate %38, %39 in 1 : vector<32x4xf32>, vector<32x12xf32> -> vector<32x16xf32>
    %cst_17 = arith.constant 0.000000e+00 : f32
    %41 = vector.broadcast %cst_17 : f32 to vector<32x3xf32>
    %42 = vector.extract_strided_slice %8 {offsets = [0, 0], sizes = [32, 13], strides = [1, 1]} : vector<32x16xf32> to vector<32x13xf32>
    %43 = tpu.concatenate %41, %42 in 1 : vector<32x3xf32>, vector<32x13xf32> -> vector<32x16xf32>
    %cst_18 = arith.constant 0.000000e+00 : f32
    %44 = vector.broadcast %cst_18 : f32 to vector<32x16xf32>
    %45 = arith.select %32, %43, %44 : vector<32x16xi1>, vector<32x16xf32>
    %cst_19 = arith.constant 0.000000e+00 : f32
    %46 = vector.broadcast %cst_19 : f32 to vector<32x1xf32>
    %47 = vector.extract_strided_slice %8 {offsets = [0, 0], sizes = [32, 15], strides = [1, 1]} : vector<32x16xf32> to vector<32x15xf32>
    %48 = tpu.concatenate %46, %47 in 1 : vector<32x1xf32>, vector<32x15xf32> -> vector<32x16xf32>
    %cst_20 = arith.constant 0.000000e+00 : f32
    %49 = vector.broadcast %cst_20 : f32 to vector<32x16xf32>
    %50 = arith.select %30, %48, %49 : vector<32x16xi1>, vector<32x16xf32>
    %51 = vector.extract_strided_slice %8 {offsets = [0, 1], sizes = [32, 15], strides = [1, 1]} : vector<32x16xf32> to vector<32x15xf32>
    %cst_21 = arith.constant 0.000000e+00 : f32
    %52 = vector.broadcast %cst_21 : f32 to vector<32x1xf32>
    %53 = tpu.concatenate %51, %52 in 1 : vector<32x15xf32>, vector<32x1xf32> -> vector<32x16xf32>
    %cst_22 = arith.constant 0.000000e+00 : f32
    %54 = vector.broadcast %cst_22 : f32 to vector<32x16xf32>
    %55 = arith.select %32, %53, %54 : vector<32x16xi1>, vector<32x16xf32>
    %56 = vector.extract_strided_slice %8 {offsets = [0, 3], sizes = [32, 13], strides = [1, 1]} : vector<32x16xf32> to vector<32x13xf32>
    %cst_23 = arith.constant 0.000000e+00 : f32
    %57 = vector.broadcast %cst_23 : f32 to vector<32x3xf32>
    %58 = tpu.concatenate %56, %57 in 1 : vector<32x13xf32>, vector<32x3xf32> -> vector<32x16xf32>
    %cst_24 = arith.constant 0.000000e+00 : f32
    %59 = vector.broadcast %cst_24 : f32 to vector<32x16xf32>
    %60 = arith.select %30, %58, %59 : vector<32x16xi1>, vector<32x16xf32>
    %61 = vector.extract_strided_slice %8 {offsets = [0, 4], sizes = [32, 12], strides = [1, 1]} : vector<32x16xf32> to vector<32x12xf32>
    %cst_25 = arith.constant 0.000000e+00 : f32
    %62 = vector.broadcast %cst_25 : f32 to vector<32x4xf32>
    %63 = tpu.concatenate %61, %62 in 1 : vector<32x12xf32>, vector<32x4xf32> -> vector<32x16xf32>
    %64 = vector.extract_strided_slice %8 {offsets = [0, 5], sizes = [32, 11], strides = [1, 1]} : vector<32x16xf32> to vector<32x11xf32>
    %cst_26 = arith.constant 0.000000e+00 : f32
    %65 = vector.broadcast %cst_26 : f32 to vector<32x5xf32>
    %66 = tpu.concatenate %64, %65 in 1 : vector<32x11xf32>, vector<32x5xf32> -> vector<32x16xf32>
    %cst_27 = arith.constant 0.000000e+00 : f32
    %67 = vector.broadcast %cst_27 : f32 to vector<32x16xf32>
    %68 = arith.select %32, %66, %67 : vector<32x16xi1>, vector<32x16xf32>
    %cst_28 = arith.constant 0.000000e+00 : f32
    %69 = vector.broadcast %cst_28 : f32 to vector<32x16xf32>
    %70 = arith.addf %69, %37 : vector<32x16xf32>
    %71 = arith.addf %70, %40 : vector<32x16xf32>
    %72 = arith.addf %71, %45 : vector<32x16xf32>
    %73 = arith.addf %72, %50 : vector<32x16xf32>
    %74 = arith.addf %73, %8 : vector<32x16xf32>
    %75 = arith.addf %74, %55 : vector<32x16xf32>
    %76 = arith.addf %75, %60 : vector<32x16xf32>
    %77 = arith.addf %76, %63 : vector<32x16xf32>
    %78 = arith.addf %77, %68 : vector<32x16xf32>
    %cst_29 = arith.constant 0.111111112 : f32
    %79 = vector.broadcast %cst_29 : f32 to vector<32x16xf32>
    %80 = arith.mulf %78, %79 : vector<32x16xf32>
    %c0_30 = arith.constant 0 : index
    %c0_31 = arith.constant 0 : index
    %c0_32 = arith.constant 0 : index
    %81 = vector.load %arg5[%c0_30, %c0_31, %c0_32] : memref<1x32x16xf32, #tpu.memory_space<vmem>>, vector<1x32x16xf32>
    %82 = vector.shape_cast %81 : vector<1x32x16xf32> to vector<32x16xf32>
    %83 = vector.shape_cast %80 : vector<32x16xf32> to vector<1x32x16xf32>
    tpu.vector_store %arg5[%c0_30, %c0_31, %c0_32], %83 {strides = array<i32>} : memref<1x32x16xf32, #tpu.memory_space<vmem>>, vector<1x32x16xf32>,
    return
  }
  func.func @transform_0(%arg0: i32) -> (i32, i32, i32) {
    %c0_i32 = arith.constant 0 : i32
    %c0_i32_0 = arith.constant 0 : i32
    %c0_i32_1 = arith.constant 0 : i32
    return %arg0, %c0_i32, %c0_i32_0 : i32, i32, i32
  }
  func.func @transform_1(%arg0: i32) -> (i32, i32) {
    %c0_i32 = arith.constant 0 : i32
    %c0_i32_0 = arith.constant 0 : i32
    %c0_i32_1 = arith.constant 0 : i32
    return %c0_i32, %c0_i32_0 : i32, i32
  }
  func.func @transform_2(%arg0: i32) -> (i32, i32) {
    %c0_i32 = arith.constant 0 : i32
    %c0_i32_0 = arith.constant 0 : i32
    %c0_i32_1 = arith.constant 0 : i32
    return %c0_i32, %c0_i32_0 : i32, i32
  }
  func.func @transform_3(%arg0: i32) -> (i32, i32, i32) {
    %c0_i32 = arith.constant 0 : i32
    %c0_i32_0 = arith.constant 0 : i32
    %c0_i32_1 = arith.constant 0 : i32
    return %arg0, %c0_i32, %c0_i32_0 : i32, i32, i32
  }
  func.func @transform_4(%arg0: i32) -> (i32, i32, i32) {
    %c0_i32 = arith.constant 0 : i32
    %c0_i32_0 = arith.constant 0 : i32
    %c0_i32_1 = arith.constant 0 : i32
    return %arg0, %c0_i32, %c0_i32_0 : i32, i32, i32
  }
}

</mosaic_0001>

<llo_original>
// kernel: _forward_impl.5
$region0: #{_forward_impl.5}
  #allocation0 [shape = 'u32[]', space=smem, size = 0x4, offset = 0x4, fixed_abs, tag = 'smem constant byte address 0x4 - core index']
  #allocation1 [shape = 'u32[144,128]{1,0:T(1,128)}', space=vmem, size = 0x12000, scoped, tag = 'internal scratch']
  %s0 = inlined_call_operand.vmem [shape: f32[2,8,256], index: 0, kind: input, shape index: {}]
  %s1 = inlined_call_operand.vmem [shape: f32[8,72], index: 1, kind: input, shape index: {}]
  %s2 = inlined_call_operand.vmem [shape: f32[8,1], index: 2, kind: input, shape index: {}]
  %s3 = inlined_call_operand.vmem [shape: f32[2,8,256], index: 3, kind: output, shape index: {0}]
  %s4 = inlined_call_operand.vmem [shape: f32[2,8,256], index: 4, kind: output, shape index: {1}]
  %5 = xla_tuple %s3, %s4
  %s6 = sld [smem:[#allocation0]]
  $region53: #{_forward_impl.5} parent=0
    _
  %s8 = ssub.s32 1, %s6
  %s9 = scalar_select 0, %s8, %s6
  loop: start=0, step=1, limit=4
  $region2: #{_forward_impl.5} parent=0 // loop_pre_header
    _
  $region3: #{_forward_impl.5} parent=0 // loop_header
    %s11 = sphi 0, %s15
    %p12 = scmp.ge.s32.totalorder %s11, 4
    %s21 = sphi 0, %s23
    %s24 = sphi 0, %s21
    %s25 = sphi 0, %s24
    %s41 = sphi 0, %s25
    %s45 = sphi 0, %s45
    %s47 = sphi 0, %s45
    %s48 = sphi 0, %s47
    %s62 = sphi 0, %s48
    %s66 = sphi 0, %s66
    %s68 = sphi 0, %s66
    %s69 = sphi 0, %s68
    %s83 = sphi 0, %s69
    %s89 = sphi 0, %s91
    %s92 = sphi 0, %s89
    %s93 = sphi 0, %s92
    %s109 = sphi 0, %s93
    %s115 = sphi 0, %s117
    %s118 = sphi 0, %s115
    %s119 = sphi 0, %s118
    %s135 = sphi 0, %s119
  $region4: #{_forward_impl.5} parent=0 // loop_header_branch
    %14 = sbr.rel (%p12) target = $region8
  $region5: #{_forward_impl.5} parent=0 // loop_body
    %s16 = ssub.s32 %s11, 1
    %s17 = ssub.s32 %s11, 2
    %s18 = sadd.s32 %s11, 1
    %s19 = ssub.s32 %s11, %s18
    %p20 = scmp.eq.s32.totalorder %s19, 0
    %s22 = sadd.s32 %s21, 1
    %s23 = scalar_select %p20, %s21, %s22
    %p26 = pneg %p20
    %p27 = scmp.eq.s32.totalorder %s11, 1
    %p28 = por %p26, %p27
    %p29 = scmp.ne.s32.totalorder %s21, %s24
    %p30 = scmp.eq.s32.totalorder %s11, 0
    %p31 = por %p29, %p30
    %p32 = scmp.ne.s32.totalorder %s21, %s24
    %p33 = scmp.eq.s32.totalorder %s16, 1
    %p34 = por %p32, %p33
    %p35 = scmp.ne.s32.totalorder %s24, %s25
    %p36 = scmp.eq.s32.totalorder %s16, 0
    %p37 = por %p35, %p36
    %p38 = scmp.ne.s32.totalorder %s24, %s25
    %p39 = scmp.eq.s32.totalorder %s17, 1
    %p40 = por %p38, %p39
    %p42 = scmp.ne.s32.totalorder %s25, %s41
    %p43 = scmp.eq.s32.totalorder %s17, 0
    %p44 = por %p42, %p43
    %s46 = sadd.s32 %s45, 1
    %p49 = scmp.eq.s32.totalorder %s11, 1
    %p50 = scmp.ne.s32.totalorder %s45, %s47
    %p51 = scmp.eq.s32.totalorder %s11, 0
    %p52 = por %p50, %p51
    %p53 = scmp.ne.s32.totalorder %s45, %s47
    %p54 = scmp.eq.s32.totalorder %s16, 1
    %p55 = por %p53, %p54
    %p56 = scmp.ne.s32.totalorder %s47, %s48
    %p57 = scmp.eq.s32.totalorder %s16, 0
    %p58 = por %p56, %p57
    %p59 = scmp.ne.s32.totalorder %s47, %s48
    %p60 = scmp.eq.s32.totalorder %s17, 1
    %p61 = por %p59, %p60
    %p63 = scmp.ne.s32.totalorder %s48, %s62
    %p64 = scmp.eq.s32.totalorder %s17, 0
    %p65 = por %p63, %p64
    %s67 = sadd.s32 %s66, 1
    %p70 = scmp.eq.s32.totalorder %s11, 1
    %p71 = scmp.ne.s32.totalorder %s66, %s68
    %p72 = scmp.eq.s32.totalorder %s11, 0
    %p73 = por %p71, %p72
    %p74 = scmp.ne.s32.totalorder %s66, %s68
    %p75 = scmp.eq.s32.totalorder %s16, 1
    %p76 = por %p74, %p75
    %p77 = scmp.ne.s32.totalorder %s68, %s69
    %p78 = scmp.eq.s32.totalorder %s16, 0
    %p79 = por %p77, %p78
    %p80 = scmp.ne.s32.totalorder %s68, %s69
    %p81 = scmp.eq.s32.totalorder %s17, 1
    %p82 = por %p80, %p81
    %p84 = scmp.ne.s32.totalorder %s69, %s83
    %p85 = scmp.eq.s32.totalorder %s17, 0
    %p86 = por %p84, %p85
    %s87 = ssub.s32 %s11, %s18
    %p88 = scmp.eq.s32.totalorder %s87, 0
    %s90 = sadd.s32 %s89, 1
    %s91 = scalar_select %p88, %s89, %s90
    %p94 = pneg %p88
    %p95 = scmp.eq.s32.totalorder %s11, 1
    %p96 = por %p94, %p95
    %p97 = scmp.ne.s32.totalorder %s89, %s92
    %p98 = scmp.eq.s32.totalorder %s11, 0
    %p99 = por %p97, %p98
    %p100 = scmp.ne.s32.totalorder %s89, %s92
    %p101 = scmp.eq.s32.totalorder %s16, 1
    %p102 = por %p100, %p101
    %p103 = scmp.ne.s32.totalorder %s92, %s93
    %p104 = scmp.eq.s32.totalorder %s16, 0
    %p105 = por %p103, %p104
    %p106 = scmp.ne.s32.totalorder %s92, %s93
    %p107 = scmp.eq.s32.totalorder %s17, 1
    %p108 = por %p106, %p107
    %p110 = scmp.ne.s32.totalorder %s93, %s109
    %p111 = scmp.eq.s32.totalorder %s17, 0
    %p112 = por %p110, %p111
    %s113 = ssub.s32 %s11, %s18
    %p114 = scmp.eq.s32.totalorder %s113, 0
    %s116 = sadd.s32 %s115, 1
    %s117 = scalar_select %p114, %s115, %s116
    %p120 = pneg %p114
    %p121 = scmp.eq.s32.totalorder %s11, 1
    %p122 = por %p120, %p121
    %p123 = scmp.ne.s32.totalorder %s115, %s118
    %p124 = scmp.eq.s32.totalorder %s11, 0
    %p125 = por %p123, %p124
    %p126 = scmp.ne.s32.totalorder %s115, %s118
    %p127 = scmp.eq.s32.totalorder %s16, 1
    %p128 = por %p126, %p127
    %p129 = scmp.ne.s32.totalorder %s118, %s119
    %p130 = scmp.eq.s32.totalorder %s16, 0
    %p131 = por %p129, %p130
    %p132 = scmp.ne.s32.totalorder %s118, %s119
    %p133 = scmp.eq.s32.totalorder %s17, 1
    %p134 = por %p132, %p133
    %p136 = scmp.ne.s32.totalorder %s119, %s135
    %p137 = scmp.eq.s32.totalorder %s17, 0
    %p138 = por %p136, %p137
    %p139 = scmp.le.s32.totalorder 1, %s11
    %p140 = scmp.lt.s32.totalorder %s11, 3
    %p141 = pnand %p139, %p140
    %p142 = pneg %p141
    // Predicated region
    $region9: #{_forward_impl.5} parent=5 // pred_check
      _
    $region10: #{_forward_impl.5} parent=5 // pred_check_branch
      %144 = sbr.rel (%p141) target = $region12
    $region11: #{_forward_impl.5} parent=5 // pred_region
      %s145 = ssub.s32 %s11, 1
      // Predicated region
      $region13: #{_forward_impl.5} parent=11 // pred_check
        %p146 = pneg %p58
      $region14: #{_forward_impl.5} parent=11 // pred_check_branch
        %148 = sbr.rel (%p146) target = $region16
      $region15: #{_forward_impl.5} parent=11 // pred_region
        _
      $region16: #{_forward_impl.5} parent=11 // pred_fallthru
        _
      // Predicated region
      $region17: #{_forward_impl.5} parent=11 // pred_check
        %p149 = pneg %p79
      $region18: #{_forward_impl.5} parent=11 // pred_check_branch
        %151 = sbr.rel (%p149) target = $region20
      $region19: #{_forward_impl.5} parent=11 // pred_region
        _
      $region20: #{_forward_impl.5} parent=11 // pred_fallthru
        _
    $region12: #{_forward_impl.5} parent=5 // pred_fallthru
      _
    %p152 = scmp.lt.s32.totalorder %s11, 2
    // Predicated region
    $region21: #{_forward_impl.5} parent=5 // pred_check
      %p153 = pneg %p152
    $region22: #{_forward_impl.5} parent=5 // pred_check_branch
      %155 = sbr.rel (%p153) target = $region24
    $region23: #{_forward_impl.5} parent=5 // pred_region
      // Predicated region
      $region25: #{_forward_impl.5} parent=23 // pred_check
        %p156 = pneg %p31
      $region26: #{_forward_impl.5} parent=23 // pred_check_branch
        %158 = sbr.rel (%p156) target = $region28
      $region27: #{_forward_impl.5} parent=23 // pred_region
        %p159 = scmp.lt.s32.totalorder %s11, 1
        %s160 = scalar_select %p159, %s11, 1
        %s161 = smul.addr %s160, 2
        %s162 = smul.addr %s161, 8
        %s163 = scalar_lea.vmem %s0, %s162
      $region28: #{_forward_impl.5} parent=23 // pred_fallthru
        _
    $region24: #{_forward_impl.5} parent=5 // pred_fallthru
      _
    %p164 = scmp.le.s32.totalorder 1, %s11
    %p165 = scmp.lt.s32.totalorder %s11, 3
    %p166 = pnand %p164, %p165
    %p167 = pneg %p166
    // Predicated region
    $region29: #{_forward_impl.5} parent=5 // pred_check
      _
    $region30: #{_forward_impl.5} parent=5 // pred_check_branch
      %169 = sbr.rel (%p166) target = $region32
    $region31: #{_forward_impl.5} parent=5 // pred_region
      %s170 = ssub.s32 %s11, 1
      %p171 = scmp.lt.s32.totalorder %s16, 1
      %s172 = scalar_select %p171, %s16, 1
      %s173 = smul.addr %s172, 2
      %s174 = smul.addr %s173, 8
      %s175 = scalar_lea.vmem %s0, %s174
      %p176 = pneg %p37
      %p177 = pneg %p34
      %p178 = pneg %p58
      %p179 = pneg %p55
      %p180 = pneg %p79
      %p181 = pneg %p76
      %p182 = pneg %p105
      %p183 = pneg %p102
      %p184 = scmp.lt.s32.totalorder %s16, 1
      %s185 = scalar_select %p184, %s16, 1
      %s186 = smul.addr %s185, 2
      %s187 = smul.addr %s186, 8
      %s188 = scalar_lea.vmem %s3, %s187
      %p189 = pneg %p131
      %p190 = pneg %p128
      %p191 = scmp.lt.s32.totalorder %s16, 1
      %s192 = scalar_select %p191, %s16, 1
      %s193 = smul.addr %s192, 2
      %s194 = smul.addr %s193, 8
      %s195 = scalar_lea.vmem %s4, %s194
      %p196 = scmp.lt.s32.totalorder %s16, 1
      %s197 = scalar_select %p196, %s16, 1
      %s198 = smul.addr %s197, 2
      %s199 = smul.addr %s198, 8
      %s200 = scalar_lea.vmem %s0, %s199
      %p201 = scmp.lt.s32.totalorder %s16, 1
      %s202 = scalar_select %p201, %s16, 1
      %s203 = smul.addr %s202, 2
      %s204 = smul.addr %s203, 8
      %s205 = scalar_lea.vmem %s3, %s204
      %p206 = scmp.lt.s32.totalorder %s16, 1
      %s207 = scalar_select %p206, %s16, 1
      %s208 = smul.addr %s207, 2
      %s209 = smul.addr %s208, 8
      %s210 = scalar_lea.vmem %s4, %s209
      %v211 = vld [vmem:[%s200] sm:$0xff]
      %v212 = vld [vmem:[%s200 + $0x8] sm:$0xff]
      %v213 = vlaneseq
      %v214 = vand.u32 %v213, 127
      %v215 = vadd.s32 %v214, 128
      %vm216 = vcmp.lt.s32.totalorder %v214, 0
      %v217 = vsub.s32 0, %v214
      %v218 = vsel %vm216, %v217, %v214
      %v219 = vshrl.u32 %v218, 4
      %v220 = vand.u32 %v218, 15
      %v221 = vsub.s32 0, %v220
      %v222 = vsel %vm216, %v221, %v220
      %vm223 = vcmp.lt.s32.totalorder %v215, 0
      %v224 = vsub.s32 0, %v215
      %v225 = vsel %vm223, %v224, %v215
      %v226 = vshrl.u32 %v225, 4
      %v227 = vand.u32 %v225, 15
      %v228 = vsub.s32 0, %v227
      %v229 = vsel %vm223, %v228, %v227
      %vm230 = vcmp.ne.s32.totalorder %v222, 0
      %vm231 = vcmp.ne.s32.totalorder %v229, 0
      %vm232 = vcmp.lt.s32.totalorder %v222, 0
      %vm233 = vcmp.lt.s32.totalorder %v229, 0
      %vm234 = vmand %vm232, %vm230
      %vm235 = vmand %vm233, %vm231
      %v236 = vadd.s32 %v222, 16
      %v237 = vadd.s32 %v229, 16
      %v238 = vsel %vm234, %v236, %v222
      %v239 = vsel %vm235, %v237, %v229
      %vm240 = vcmp.gt.s32.totalorder %v238, 0
      %vm241 = vcmp.gt.s32.totalorder %v239, 0
      %vm242 = vcmp.lt.s32.totalorder %v238, 15
      %vm243 = vcmp.lt.s32.totalorder %v239, 15
      %246 = vrot.lane.b32.xlu0 %v211, 17
      %v247 = vpop.permute.xlu0 %246
      %248 = vrot.lane.b32.xlu0 %v212, 17
      %v249 = vpop.permute.xlu0 %248
      %vm250 = vcmask 138240
      %v251 = vsel %vm250, %v247, %v249
      %v254 = vsel %vm250, 0.0, %v247
      %v255 = vsel %vm240, %v254, 0.0
      %v256 = vsel %vm241, %v251, 0.0
      %257 = vrot.lane.b32.xlu0 %v211, 16
      %v258 = vpop.permute.xlu0 %257
      %259 = vrot.lane.b32.xlu0 %v212, 16
      %v260 = vpop.permute.xlu0 %259
      %vm261 = vcmask 130048
      %v262 = vsel %vm261, %v258, %v260
      %v265 = vsel %vm261, 0.0, %v258
      %266 = vrot.lane.b32.xlu0 %v211, 15
      %v267 = vpop.permute.xlu0 %266
      %268 = vrot.lane.b32.xlu0 %v212, 15
      %v269 = vpop.permute.xlu0 %268
      %vm270 = vcmask 121856
      %v271 = vsel %vm270, %v267, %v269
      %v274 = vsel %vm270, 0.0, %v267
      %v275 = vsel %vm242, %v274, 0.0
      %v276 = vsel %vm243, %v271, 0.0
      %277 = vrot.lane.b32.xlu0 %v211, 1
      %v278 = vpop.permute.xlu0 %277
      %279 = vrot.lane.b32.xlu0 %v212, 1
      %v280 = vpop.permute.xlu0 %279
      %vm281 = vcmask 7168
      %v282 = vsel %vm281, %v278, %v280
      %v285 = vsel %vm281, 0.0, %v278
      %v286 = vsel %vm240, %v285, 0.0
      %v287 = vsel %vm241, %v282, 0.0
      %288 = vrot.lane.b32.xlu0 %v211, 127
      %v289 = vpop.permute.xlu0 %288
      %290 = vrot.lane.b32.xlu0 %v212, 127
      %v291 = vpop.permute.xlu0 %290
      %vm292 = vcmask 1039360
      %v293 = vsel %vm292, %v289, %v291
      %v296 = vsel %vm292, %v291, 0.0
      %v297 = vsel %vm242, %v293, 0.0
      %v298 = vsel %vm243, %v296, 0.0
      %299 = vrot.lane.b32.xlu0 %v211, 113
      %v300 = vpop.permute.xlu0 %299
      %301 = vrot.lane.b32.xlu0 %v212, 113
      %v302 = vpop.permute.xlu0 %301
      %vm303 = vcmask 924672
      %v304 = vsel %vm303, %v300, %v302
      %v307 = vsel %vm303, %v302, 0.0
      %v308 = vsel %vm240, %v304, 0.0
      %v309 = vsel %vm241, %v307, 0.0
      %310 = vrot.lane.b32.xlu0 %v211, 112
      %v311 = vpop.permute.xlu0 %310
      %312 = vrot.lane.b32.xlu0 %v212, 112
      %v313 = vpop.permute.xlu0 %312
      %vm314 = vcmask 916480
      %v315 = vsel %vm314, %v311, %v313
      %v318 = vsel %vm314, %v313, 0.0
      %319 = vrot.lane.b32.xlu0 %v211, 111
      %v320 = vpop.permute.xlu0 %319
      %321 = vrot.lane.b32.xlu0 %v212, 111
      %v322 = vpop.permute.xlu0 %321
      %vm323 = vcmask 908288
      %v324 = vsel %vm323, %v320, %v322
      %v327 = vsel %vm323, %v322, 0.0
      %v328 = vsel %vm242, %v324, 0.0
      %v329 = vsel %vm243, %v327, 0.0
      %v330 = vld [vmem:[%s1] sm:$0xff]
      %v331 = vld [vmem:[%s2] sm:$0xff]
      %333 = vset.pattern.permute.xlu0 0
      %334 = vperm.xlu0 %333, %v331
      %v335 = vpop.permute.xlu0 %334
      %vm337 = vcmask 588800
      %v339 = vsel %vm337, %v330, 0
      %341 = vmatprep.subr.mxu0 0.0
      %342 = vmatpush1.msra.mxu0 0.0
      %343 = vmatprep.subr.mxu0 0.0
      %344 = vmatpush1.msra.mxu0 0.0
      %345 = vmatprep.subr.mxu0 0.0
      %346 = vmatpush1.msra.mxu0 0.0
      %347 = vmatprep.subr.mxu0 0.0
      %348 = vmatpush1.msra.mxu0 0.0
      %349 = vmatprep.subr.mxu0 0.0
      %350 = vmatpush1.msra.mxu0 0.0
      %351 = vmatprep.subr.mxu0 0.0
      %352 = vmatpush1.msra.mxu0 0.0
      %353 = vmatprep.subr.mxu0 0.0
      %354 = vmatpush1.msra.mxu0 0.0
      %355 = vmatprep.subr.mxu0 %v329
      %356 = vmatpush1.msra.mxu0 %v328
      %357 = vmatprep.subr.mxu0 %v318
      %358 = vmatpush1.msra.mxu0 %v315
      %359 = vmatprep.subr.mxu0 %v309
      %360 = vmatpush1.msra.mxu0 %v308
      %361 = vmatprep.subr.mxu0 %v298
      %362 = vmatpush1.msra.mxu0 %v297
      %363 = vmatprep.subr.mxu0 %v212
      %364 = vmatpush1.msra.mxu0 %v211
      %365 = vmatprep.subr.mxu0 %v287
      %366 = vmatpush1.msra.mxu0 %v286
      %367 = vmatprep.subr.mxu0 %v276
      %368 = vmatpush1.msra.mxu0 %v275
      %369 = vmatprep.subr.mxu0 %v262
      %370 = vmatpush1.msra.mxu0 %v265
      %371 = vmatprep.subr.mxu0 %v256
      %372 = vmatpush1.msra.mxu0 %v255
      %373 = vmatprep.subr.mxu0 0.0
      %374 = vmatpush2.msra.mxu0 0.0
      %375 = vmatprep.subr.mxu0 0.0
      %376 = vmatpush2.msra.mxu0 0.0
      %377 = vmatprep.subr.mxu0 0.0
      %378 = vmatpush2.msra.mxu0 0.0
      %379 = vmatprep.subr.mxu0 0.0
      %380 = vmatpush2.msra.mxu0 0.0
      %381 = vmatprep.subr.mxu0 0.0
      %382 = vmatpush2.msra.mxu0 0.0
      %383 = vmatprep.subr.mxu0 0.0
      %384 = vmatpush2.msra.mxu0 0.0
      %385 = vmatprep.subr.mxu0 0.0
      %386 = vmatpush2.msra.mxu0 0.0
      %387 = vmatprep.subr.mxu0 0.0
      %388 = vmatpush2.msra.mxu0 0.0
      %389 = vmatprep.subr.mxu0 0.0
      %390 = vmatpush2.msra.mxu0 0.0
      %391 = vmatprep.subr.mxu0 0.0
      %392 = vmatpush2.msra.mxu0 0.0
      %393 = vmatprep.subr.mxu0 0.0
      %394 = vmatpush2.msra.mxu0 0.0
      %395 = vmatprep.subr.mxu0 0.0
      %396 = vmatpush2.msra.mxu0 0.0
      %397 = vmatprep.subr.mxu0 0.0
      %398 = vmatpush2.msra.mxu0 0.0
      %399 = vmatprep.subr.mxu0 0.0
      %400 = vmatpush2.msra.mxu0 0.0
      %401 = vmatprep.subr.mxu0 0.0
      %402 = vmatpush2.msra.mxu0 0.0
      %403 = vmatprep.subr.mxu0 0.0
      %404 = vmatpush2.msra.mxu0 0.0
      %405 = vmatprep.mubr.f32.mxu0 0.0
      %406 = vmatmul.mubr.f32.gmra.mxu0 %v339
      %v407 = vpop.f32.mrf.mxu0
      %v408 = vadd.f32 %v335, %v407
      %v409 = vpop.f32.mrf.mxu0
      %v410 = vadd.f32 %v335, %v409
      %411 = vdwg.mxu0
      %v412 = vmax.f32 %v408, 0.0
      %v413 = vmax.f32 %v410, 0.0
      %414 = vst [vmem:[%s205] sm:$0xff] %v412
      %415 = vst [vmem:[%s205 + $0x8] sm:$0xff] %v413
      %418 = vrot.lane.b32.xlu0 %v412, 17
      %v419 = vpop.permute.xlu0 %418
      %420 = vrot.lane.b32.xlu0 %v413, 17
      %v421 = vpop.permute.xlu0 %420
      %v422 = vsel %vm250, %v419, %v421
      %v425 = vsel %vm250, 0.0, %v419
      %v426 = vsel %vm240, %v425, 0.0
      %v427 = vsel %vm241, %v422, 0.0
      %428 = vrot.lane.b32.xlu0 %v412, 16
      %v429 = vpop.permute.xlu0 %428
      %430 = vrot.lane.b32.xlu0 %v413, 16
      %v431 = vpop.permute.xlu0 %430
      %v432 = vsel %vm261, %v429, %v431
      %v435 = vsel %vm261, 0.0, %v429
      %436 = vrot.lane.b32.xlu0 %v412, 15
      %v437 = vpop.permute.xlu0 %436
      %438 = vrot.lane.b32.xlu0 %v413, 15
      %v439 = vpop.permute.xlu0 %438
      %v440 = vsel %vm270, %v437, %v439
      %v443 = vsel %vm270, 0.0, %v437
      %v444 = vsel %vm242, %v443, 0.0
      %v445 = vsel %vm243, %v440, 0.0
      %446 = vrot.lane.b32.xlu0 %v412, 1
      %v447 = vpop.permute.xlu0 %446
      %448 = vrot.lane.b32.xlu0 %v413, 1
      %v449 = vpop.permute.xlu0 %448
      %v450 = vsel %vm281, %v447, %v449
      %v453 = vsel %vm281, 0.0, %v447
      %v454 = vsel %vm240, %v453, 0.0
      %v455 = vsel %vm241, %v450, 0.0
      %456 = vrot.lane.b32.xlu0 %v412, 127
      %v457 = vpop.permute.xlu0 %456
      %458 = vrot.lane.b32.xlu0 %v413, 127
      %v459 = vpop.permute.xlu0 %458
      %v460 = vsel %vm292, %v457, %v459
      %v463 = vsel %vm292, %v459, 0.0
      %v464 = vsel %vm242, %v460, 0.0
      %v465 = vsel %vm243, %v463, 0.0
      %466 = vrot.lane.b32.xlu0 %v412, 113
      %v467 = vpop.permute.xlu0 %466
      %468 = vrot.lane.b32.xlu0 %v413, 113
      %v469 = vpop.permute.xlu0 %468
      %v470 = vsel %vm303, %v467, %v469
      %v473 = vsel %vm303, %v469, 0.0
      %v474 = vsel %vm240, %v470, 0.0
      %v475 = vsel %vm241, %v473, 0.0
      %476 = vrot.lane.b32.xlu0 %v412, 112
      %v477 = vpop.permute.xlu0 %476
      %478 = vrot.lane.b32.xlu0 %v413, 112
      %v479 = vpop.permute.xlu0 %478
      %v480 = vsel %vm314, %v477, %v479
      %v483 = vsel %vm314, %v479, 0.0
      %484 = vrot.lane.b32.xlu0 %v412, 111
      %v485 = vpop.permute.xlu0 %484
      %486 = vrot.lane.b32.xlu0 %v413, 111
      %v487 = vpop.permute.xlu0 %486
      %v488 = vsel %vm323, %v485, %v487
      %v491 = vsel %vm323, %v487, 0.0
      %v492 = vsel %vm242, %v488, 0.0
      %v493 = vsel %vm243, %v491, 0.0
      %v494 = vadd.f32 %v426, 0.0
      %v495 = vadd.f32 %v427, 0.0
      %v496 = vadd.f32 %v494, %v435
      %v497 = vadd.f32 %v495, %v432
      %v498 = vadd.f32 %v496, %v444
      %v499 = vadd.f32 %v497, %v445
      %v500 = vadd.f32 %v498, %v454
      %v501 = vadd.f32 %v499, %v455
      %v502 = vadd.f32 %v500, %v412
      %v503 = vadd.f32 %v501, %v413
      %v504 = vadd.f32 %v502, %v464
      %v505 = vadd.f32 %v503, %v465
      %v506 = vadd.f32 %v504, %v474
      %v507 = vadd.f32 %v505, %v475
      %v508 = vadd.f32 %v506, %v480
      %v509 = vadd.f32 %v507, %v483
      %v510 = vadd.f32 %v508, %v492
      %v511 = vadd.f32 %v509, %v493
      %v512 = vmul.f32 %v510, 0.11111111
      %v513 = vmul.f32 %v511, 0.11111111
      %514 = vst [vmem:[%s210] sm:$0xff] %v512
      %515 = vst [vmem:[%s210 + $0x8] sm:$0xff] %v513
      %p516 = scmp.lt.s32.totalorder %s16, 1
      %s517 = scalar_select %p516, %s16, 1
      %s518 = smul.addr %s517, 2
      %s519 = smul.addr %s518, 8
      %s520 = scalar_lea.vmem %s3, %s519
      %p521 = scmp.lt.s32.totalorder %s16, 1
      %s522 = scalar_select %p521, %s16, 1
      %s523 = smul.addr %s522, 2
      %s524 = smul.addr %s523, 8
      %s525 = scalar_lea.vmem %s4, %s524
      // Predicated region
      $region33: #{_forward_impl.5} parent=31 // pred_check
        %p526 = pneg %p102
      $region34: #{_forward_impl.5} parent=31 // pred_check_branch
        %528 = sbr.rel (%p526) target = $region36
      $region35: #{_forward_impl.5} parent=31 // pred_region
        _
      $region36: #{_forward_impl.5} parent=31 // pred_fallthru
        _
      // Predicated region
      $region37: #{_forward_impl.5} parent=31 // pred_check
        %p529 = pneg %p128
      $region38: #{_forward_impl.5} parent=31 // pred_check_branch
        %531 = sbr.rel (%p529) target = $region40
      $region39: #{_forward_impl.5} parent=31 // pred_region
        _
      $region40: #{_forward_impl.5} parent=31 // pred_fallthru
        _
    $region32: #{_forward_impl.5} parent=5 // pred_fallthru
      _
    %p532 = scmp.le.s32.totalorder 2, %s11
    // Predicated region
    $region41: #{_forward_impl.5} parent=5 // pred_check
      %p533 = pneg %p532
    $region42: #{_forward_impl.5} parent=5 // pred_check_branch
      %535 = sbr.rel (%p533) target = $region44
    $region43: #{_forward_impl.5} parent=5 // pred_region
      %s536 = ssub.s32 %s11, 2
      // Predicated region
      $region45: #{_forward_impl.5} parent=43 // pred_check
        %p537 = pneg %p108
      $region46: #{_forward_impl.5} parent=43 // pred_check_branch
        %539 = sbr.rel (%p537) target = $region48
      $region47: #{_forward_impl.5} parent=43 // pred_region
        %p540 = scmp.lt.s32.totalorder %s17, 1
        %s541 = scalar_select %p540, %s17, 1
        %s542 = smul.addr %s541, 2
        %s543 = smul.addr %s542, 8
        %s544 = scalar_lea.vmem %s3, %s543
      $region48: #{_forward_impl.5} parent=43 // pred_fallthru
        _
      // Predicated region
      $region49: #{_forward_impl.5} parent=43 // pred_check
        %p545 = pneg %p134
      $region50: #{_forward_impl.5} parent=43 // pred_check_branch
        %547 = sbr.rel (%p545) target = $region52
      $region51: #{_forward_impl.5} parent=43 // pred_region
        %p548 = scmp.lt.s32.totalorder %s17, 1
        %s549 = scalar_select %p548, %s17, 1
        %s550 = smul.addr %s549, 2
        %s551 = smul.addr %s550, 8
        %s552 = scalar_lea.vmem %s4, %s551
      $region52: #{_forward_impl.5} parent=43 // pred_fallthru
        _
    $region44: #{_forward_impl.5} parent=5 // pred_fallthru
      _
  $region6: #{_forward_impl.5} parent=0 // loop_footer
    %s15 = sadd.s32 1, %s11
  $region7: #{_forward_impl.5} parent=0 // loop_footer_branch
    %10 = sbr.rel target = $region3
  $region8: #{_forward_impl.5} parent=0 // loop_exit
    _

// kernel: _forward_impl.4
$region0: #{_forward_impl.4}
  #allocation0 [shape = 'u32[]', space=smem, size = 0x4, offset = 0x4, fixed_abs, tag = 'smem constant byte address 0x4 - core index']
  #allocation1 [shape = 'u32[144,128]{1,0:T(1,128)}', space=vmem, size = 0x12000, scoped, tag = 'internal scratch']
  %s0 = inlined_call_operand.vmem [shape: f32[2,27,256], index: 0, kind: input, shape index: {}]
  %s1 = inlined_call_operand.vmem [shape: f32[8,27], index: 1, kind: input, shape index: {}]
  %s2 = inlined_call_operand.vmem [shape: f32[8,1], index: 2, kind: input, shape index: {}]
  %s3 = inlined_call_operand.vmem [shape: f32[2,8,256], index: 3, kind: output, shape index: {}]
  %s4 = sld [smem:[#allocation0]]
  $region45: #{_forward_impl.4} parent=0
    _
  %s6 = ssub.s32 1, %s4
  %s7 = scalar_select 0, %s6, %s4
  loop: start=0, step=1, limit=4
  $region2: #{_forward_impl.4} parent=0 // loop_pre_header
    _
  $region3: #{_forward_impl.4} parent=0 // loop_header
    %s9 = sphi 0, %s13
    %p10 = scmp.ge.s32.totalorder %s9, 4
    %s19 = sphi 0, %s21
    %s22 = sphi 0, %s19
    %s23 = sphi 0, %s22
    %s39 = sphi 0, %s23
    %s43 = sphi 0, %s43
    %s45 = sphi 0, %s43
    %s46 = sphi 0, %s45
    %s60 = sphi 0, %s46
    %s64 = sphi 0, %s64
    %s66 = sphi 0, %s64
    %s67 = sphi 0, %s66
    %s81 = sphi 0, %s67
    %s87 = sphi 0, %s89
    %s90 = sphi 0, %s87
    %s91 = sphi 0, %s90
    %s107 = sphi 0, %s91
  $region4: #{_forward_impl.4} parent=0 // loop_header_branch
    %12 = sbr.rel (%p10) target = $region8
  $region5: #{_forward_impl.4} parent=0 // loop_body
    %s14 = ssub.s32 %s9, 1
    %s15 = ssub.s32 %s9, 2
    %s16 = sadd.s32 %s9, 1
    %s17 = ssub.s32 %s9, %s16
    %p18 = scmp.eq.s32.totalorder %s17, 0
    %s20 = sadd.s32 %s19, 1
    %s21 = scalar_select %p18, %s19, %s20
    %p24 = pneg %p18
    %p25 = scmp.eq.s32.totalorder %s9, 1
    %p26 = por %p24, %p25
    %p27 = scmp.ne.s32.totalorder %s19, %s22
    %p28 = scmp.eq.s32.totalorder %s9, 0
    %p29 = por %p27, %p28
    %p30 = scmp.ne.s32.totalorder %s19, %s22
    %p31 = scmp.eq.s32.totalorder %s14, 1
    %p32 = por %p30, %p31
    %p33 = scmp.ne.s32.totalorder %s22, %s23
    %p34 = scmp.eq.s32.totalorder %s14, 0
    %p35 = por %p33, %p34
    %p36 = scmp.ne.s32.totalorder %s22, %s23
    %p37 = scmp.eq.s32.totalorder %s15, 1
    %p38 = por %p36, %p37
    %p40 = scmp.ne.s32.totalorder %s23, %s39
    %p41 = scmp.eq.s32.totalorder %s15, 0
    %p42 = por %p40, %p41
    %s44 = sadd.s32 %s43, 1
    %p47 = scmp.eq.s32.totalorder %s9, 1
    %p48 = scmp.ne.s32.totalorder %s43, %s45
    %p49 = scmp.eq.s32.totalorder %s9, 0
    %p50 = por %p48, %p49
    %p51 = scmp.ne.s32.totalorder %s43, %s45
    %p52 = scmp.eq.s32.totalorder %s14, 1
    %p53 = por %p51, %p52
    %p54 = scmp.ne.s32.totalorder %s45, %s46
    %p55 = scmp.eq.s32.totalorder %s14, 0
    %p56 = por %p54, %p55
    %p57 = scmp.ne.s32.totalorder %s45, %s46
    %p58 = scmp.eq.s32.totalorder %s15, 1
    %p59 = por %p57, %p58
    %p61 = scmp.ne.s32.totalorder %s46, %s60
    %p62 = scmp.eq.s32.totalorder %s15, 0
    %p63 = por %p61, %p62
    %s65 = sadd.s32 %s64, 1
    %p68 = scmp.eq.s32.totalorder %s9, 1
    %p69 = scmp.ne.s32.totalorder %s64, %s66
    %p70 = scmp.eq.s32.totalorder %s9, 0
    %p71 = por %p69, %p70
    %p72 = scmp.ne.s32.totalorder %s64, %s66
    %p73 = scmp.eq.s32.totalorder %s14, 1
    %p74 = por %p72, %p73
    %p75 = scmp.ne.s32.totalorder %s66, %s67
    %p76 = scmp.eq.s32.totalorder %s14, 0
    %p77 = por %p75, %p76
    %p78 = scmp.ne.s32.totalorder %s66, %s67
    %p79 = scmp.eq.s32.totalorder %s15, 1
    %p80 = por %p78, %p79
    %p82 = scmp.ne.s32.totalorder %s67, %s81
    %p83 = scmp.eq.s32.totalorder %s15, 0
    %p84 = por %p82, %p83
    %s85 = ssub.s32 %s9, %s16
    %p86 = scmp.eq.s32.totalorder %s85, 0
    %s88 = sadd.s32 %s87, 1
    %s89 = scalar_select %p86, %s87, %s88
    %p92 = pneg %p86
    %p93 = scmp.eq.s32.totalorder %s9, 1
    %p94 = por %p92, %p93
    %p95 = scmp.ne.s32.totalorder %s87, %s90
    %p96 = scmp.eq.s32.totalorder %s9, 0
    %p97 = por %p95, %p96
    %p98 = scmp.ne.s32.totalorder %s87, %s90
    %p99 = scmp.eq.s32.totalorder %s14, 1
    %p100 = por %p98, %p99
    %p101 = scmp.ne.s32.totalorder %s90, %s91
    %p102 = scmp.eq.s32.totalorder %s14, 0
    %p103 = por %p101, %p102
    %p104 = scmp.ne.s32.totalorder %s90, %s91
    %p105 = scmp.eq.s32.totalorder %s15, 1
    %p106 = por %p104, %p105
    %p108 = scmp.ne.s32.totalorder %s91, %s107
    %p109 = scmp.eq.s32.totalorder %s15, 0
    %p110 = por %p108, %p109
    %p111 = scmp.le.s32.totalorder 1, %s9
    %p112 = scmp.lt.s32.totalorder %s9, 3
    %p113 = pnand %p111, %p112
    %p114 = pneg %p113
    // Predicated region
    $region9: #{_forward_impl.4} parent=5 // pred_check
      _
    $region10: #{_forward_impl.4} parent=5 // pred_check_branch
      %116 = sbr.rel (%p113) target = $region12
    $region11: #{_forward_impl.4} parent=5 // pred_region
      %s117 = ssub.s32 %s9, 1
      // Predicated region
      $region13: #{_forward_impl.4} parent=11 // pred_check
        %p118 = pneg %p56
      $region14: #{_forward_impl.4} parent=11 // pred_check_branch
        %120 = sbr.rel (%p118) target = $region16
      $region15: #{_forward_impl.4} parent=11 // pred_region
        _
      $region16: #{_forward_impl.4} parent=11 // pred_fallthru
        _
      // Predicated region
      $region17: #{_forward_impl.4} parent=11 // pred_check
        %p121 = pneg %p77
      $region18: #{_forward_impl.4} parent=11 // pred_check_branch
        %123 = sbr.rel (%p121) target = $region20
      $region19: #{_forward_impl.4} parent=11 // pred_region
        _
      $region20: #{_forward_impl.4} parent=11 // pred_fallthru
        _
    $region12: #{_forward_impl.4} parent=5 // pred_fallthru
      _
    %p124 = scmp.lt.s32.totalorder %s9, 2
    // Predicated region
    $region21: #{_forward_impl.4} parent=5 // pred_check
      %p125 = pneg %p124
    $region22: #{_forward_impl.4} parent=5 // pred_check_branch
      %127 = sbr.rel (%p125) target = $region24
    $region23: #{_forward_impl.4} parent=5 // pred_region
      // Predicated region
      $region25: #{_forward_impl.4} parent=23 // pred_check
        %p128 = pneg %p29
      $region26: #{_forward_impl.4} parent=23 // pred_check_branch
        %130 = sbr.rel (%p128) target = $region28
      $region27: #{_forward_impl.4} parent=23 // pred_region
        %p131 = scmp.lt.s32.totalorder %s9, 1
        %s132 = scalar_select %p131, %s9, 1
        %s133 = smul.addr %s132, 8
        %s134 = smul.addr %s133, 8
        %s135 = scalar_lea.vmem %s0, %s134
      $region28: #{_forward_impl.4} parent=23 // pred_fallthru
        _
    $region24: #{_forward_impl.4} parent=5 // pred_fallthru
      _
    %p136 = scmp.le.s32.totalorder 1, %s9
    %p137 = scmp.lt.s32.totalorder %s9, 3
    %p138 = pnand %p136, %p137
    %p139 = pneg %p138
    // Predicated region
    $region29: #{_forward_impl.4} parent=5 // pred_check
      _
    $region30: #{_forward_impl.4} parent=5 // pred_check_branch
      %141 = sbr.rel (%p138) target = $region32
    $region31: #{_forward_impl.4} parent=5 // pred_region
      %s142 = ssub.s32 %s9, 1
      %p143 = scmp.lt.s32.totalorder %s14, 1
      %s144 = scalar_select %p143, %s14, 1
      %s145 = smul.addr %s144, 8
      %s146 = smul.addr %s145, 8
      %s147 = scalar_lea.vmem %s0, %s146
      %p148 = pneg %p35
      %p149 = pneg %p32
      %p150 = pneg %p56
      %p151 = pneg %p53
      %p152 = pneg %p77
      %p153 = pneg %p74
      %p154 = pneg %p103
      %p155 = pneg %p100
      %p156 = scmp.lt.s32.totalorder %s14, 1
      %s157 = scalar_select %p156, %s14, 1
      %s158 = smul.addr %s157, 2
      %s159 = smul.addr %s158, 8
      %s160 = scalar_lea.vmem %s3, %s159
      %p161 = scmp.lt.s32.totalorder %s14, 1
      %s162 = scalar_select %p161, %s14, 1
      %s163 = smul.addr %s162, 8
      %s164 = smul.addr %s163, 8
      %s165 = scalar_lea.vmem %s0, %s164
      %p166 = scmp.lt.s32.totalorder %s14, 1
      %s167 = scalar_select %p166, %s14, 1
      %s168 = smul.addr %s167, 2
      %s169 = smul.addr %s168, 8
      %s170 = scalar_lea.vmem %s3, %s169
      %v171 = vld [vmem:[%s165] sm:$0xff]
      %v172 = vld [vmem:[%s165 + $0x8] sm:$0xff]
      %v173 = vld [vmem:[%s165 + $0x10] sm:$0xff]
      %v174 = vld [vmem:[%s165 + $0x18] sm:$0xff]
      %v175 = vld [vmem:[%s165 + $0x20] sm:$0xff]
      %v176 = vld [vmem:[%s165 + $0x28] sm:$0xff]
      %v177 = vld [vmem:[%s165 + $0x30] sm:$0x7]
      %v178 = vld [vmem:[%s165 + $0x38] sm:$0x7]
      %v179 = vld [vmem:[%s1] sm:$0xff]
      %v180 = vld [vmem:[%s2] sm:$0xff]
      %182 = vset.pattern.permute.xlu0 0
      %183 = vperm.xlu0 %182, %v180
      %v184 = vpop.permute.xlu0 %183
      %vm186 = vcmask 220160
      %v188 = vsel %vm186, %v179, 0
      %vm190 = vcmask 1042432
      %v192 = vsel %vm190, %v177, 0
      %v195 = vsel %vm190, %v178, 0
      %197 = vmatprep.subr.mxu0 0.0
      %198 = vmatpush1.msra.mxu0 0.0
      %199 = vmatprep.subr.mxu0 0.0
      %200 = vmatpush1.msra.mxu0 0.0
      %201 = vmatprep.subr.mxu0 0.0
      %202 = vmatpush1.msra.mxu0 0.0
      %203 = vmatprep.subr.mxu0 0.0
      %204 = vmatpush1.msra.mxu0 0.0
      %205 = vmatprep.subr.mxu0 0.0
      %206 = vmatpush1.msra.mxu0 0.0
      %207 = vmatprep.subr.mxu0 0.0
      %208 = vmatpush1.msra.mxu0 0.0
      %209 = vmatprep.subr.mxu0 0.0
      %210 = vmatpush1.msra.mxu0 0.0
      %211 = vmatprep.subr.mxu0 0.0
      %212 = vmatpush1.msra.mxu0 0.0
      %213 = vmatprep.subr.mxu0 0.0
      %214 = vmatpush1.msra.mxu0 0.0
      %215 = vmatprep.subr.mxu0 0.0
      %216 = vmatpush1.msra.mxu0 0.0
      %217 = vmatprep.subr.mxu0 0.0
      %218 = vmatpush1.msra.mxu0 0.0
      %219 = vmatprep.subr.mxu0 0.0
      %220 = vmatpush1.msra.mxu0 0.0
      %221 = vmatprep.subr.mxu0 %v195
      %222 = vmatpush1.msra.mxu0 %v192
      %223 = vmatprep.subr.mxu0 %v176
      %224 = vmatpush1.msra.mxu0 %v175
      %225 = vmatprep.subr.mxu0 %v174
      %226 = vmatpush1.msra.mxu0 %v173
      %227 = vmatprep.subr.mxu0 %v172
      %228 = vmatpush1.msra.mxu0 %v171
      %229 = vmatprep.subr.mxu0 0.0
      %230 = vmatpush2.msra.mxu0 0.0
      %231 = vmatprep.subr.mxu0 0.0
      %232 = vmatpush2.msra.mxu0 0.0
      %233 = vmatprep.subr.mxu0 0.0
      %234 = vmatpush2.msra.mxu0 0.0
      %235 = vmatprep.subr.mxu0 0.0
      %236 = vmatpush2.msra.mxu0 0.0
      %237 = vmatprep.subr.mxu0 0.0
      %238 = vmatpush2.msra.mxu0 0.0
      %239 = vmatprep.subr.mxu0 0.0
      %240 = vmatpush2.msra.mxu0 0.0
      %241 = vmatprep.subr.mxu0 0.0
      %242 = vmatpush2.msra.mxu0 0.0
      %243 = vmatprep.subr.mxu0 0.0
      %244 = vmatpush2.msra.mxu0 0.0
      %245 = vmatprep.subr.mxu0 0.0
      %246 = vmatpush2.msra.mxu0 0.0
      %247 = vmatprep.subr.mxu0 0.0
      %248 = vmatpush2.msra.mxu0 0.0
      %249 = vmatprep.subr.mxu0 0.0
      %250 = vmatpush2.msra.mxu0 0.0
      %251 = vmatprep.subr.mxu0 0.0
      %252 = vmatpush2.msra.mxu0 0.0
      %253 = vmatprep.subr.mxu0 0.0
      %254 = vmatpush2.msra.mxu0 0.0
      %255 = vmatprep.subr.mxu0 0.0
      %256 = vmatpush2.msra.mxu0 0.0
      %257 = vmatprep.subr.mxu0 0.0
      %258 = vmatpush2.msra.mxu0 0.0
      %259 = vmatprep.subr.mxu0 0.0
      %260 = vmatpush2.msra.mxu0 0.0
      %261 = vmatprep.mubr.f32.mxu0 0.0
      %262 = vmatmul.mubr.f32.gmra.mxu0 %v188
      %v263 = vpop.f32.mrf.mxu0
      %v264 = vadd.f32 %v184, %v263
      %v265 = vpop.f32.mrf.mxu0
      %v266 = vadd.f32 %v184, %v265
      %267 = vdwg.mxu0
      %v268 = vmax.f32 %v264, 0.0
      %v269 = vmax.f32 %v266, 0.0
      %270 = vst [vmem:[%s170] sm:$0xff] %v268
      %271 = vst [vmem:[%s170 + $0x8] sm:$0xff] %v269
      %p272 = scmp.lt.s32.totalorder %s14, 1
      %s273 = scalar_select %p272, %s14, 1
      %s274 = smul.addr %s273, 2
      %s275 = smul.addr %s274, 8
      %s276 = scalar_lea.vmem %s3, %s275
      // Predicated region
      $region33: #{_forward_impl.4} parent=31 // pred_check
        %p277 = pneg %p100
      $region34: #{_forward_impl.4} parent=31 // pred_check_branch
        %279 = sbr.rel (%p277) target = $region36
      $region35: #{_forward_impl.4} parent=31 // pred_region
        _
      $region36: #{_forward_impl.4} parent=31 // pred_fallthru
        _
    $region32: #{_forward_impl.4} parent=5 // pred_fallthru
      _
    %p280 = scmp.le.s32.totalorder 2, %s9
    // Predicated region
    $region37: #{_forward_impl.4} parent=5 // pred_check
      %p281 = pneg %p280
    $region38: #{_forward_impl.4} parent=5 // pred_check_branch
      %283 = sbr.rel (%p281) target = $region40
    $region39: #{_forward_impl.4} parent=5 // pred_region
      %s284 = ssub.s32 %s9, 2
      // Predicated region
      $region41: #{_forward_impl.4} parent=39 // pred_check
        %p285 = pneg %p106
      $region42: #{_forward_impl.4} parent=39 // pred_check_branch
        %287 = sbr.rel (%p285) target = $region44
      $region43: #{_forward_impl.4} parent=39 // pred_region
        %p288 = scmp.lt.s32.totalorder %s15, 1
        %s289 = scalar_select %p288, %s15, 1
        %s290 = smul.addr %s289, 2
        %s291 = smul.addr %s290, 8
        %s292 = scalar_lea.vmem %s3, %s291
      $region44: #{_forward_impl.4} parent=39 // pred_fallthru
        _
    $region40: #{_forward_impl.4} parent=5 // pred_fallthru
      _
  $region6: #{_forward_impl.4} parent=0 // loop_footer
    %s13 = sadd.s32 1, %s9
  $region7: #{_forward_impl.4} parent=0 // loop_footer_branch
    %8 = sbr.rel target = $region3
  $region8: #{_forward_impl.4} parent=0 // loop_exit
    _

// kernel: _forward_impl.6
$region0: #{_forward_impl.6}
  #allocation0 [shape = 'u32[]', space=smem, size = 0x4, offset = 0x4, fixed_abs, tag = 'smem constant byte address 0x4 - core index']
  #allocation1 [shape = 'u32[144,128]{1,0:T(1,128)}', space=vmem, size = 0x12000, scoped, tag = 'internal scratch']
  %s0 = inlined_call_operand.vmem [shape: f32[2,72,64], index: 0, kind: input, shape index: {}]
  %s1 = inlined_call_operand.vmem [shape: f32[16,72], index: 1, kind: input, shape index: {}]
  %s2 = inlined_call_operand.vmem [shape: f32[16,1], index: 2, kind: input, shape index: {}]
  %s3 = inlined_call_operand.vmem [shape: f32[2,16,64], index: 3, kind: output, shape index: {0}]
  %s4 = inlined_call_operand.vmem [shape: f32[2,16,64], index: 4, kind: output, shape index: {1}]
  %5 = xla_tuple %s3, %s4
  %s6 = sld [smem:[#allocation0]]
  $region53: #{_forward_impl.6} parent=0
    _
  %s8 = ssub.s32 1, %s6
  %s9 = scalar_select 0, %s8, %s6
  loop: start=0, step=1, limit=4
  $region2: #{_forward_impl.6} parent=0 // loop_pre_header
    _
  $region3: #{_forward_impl.6} parent=0 // loop_header
    %s11 = sphi 0, %s15
    %p12 = scmp.ge.s32.totalorder %s11, 4
    %s21 = sphi 0, %s23
    %s24 = sphi 0, %s21
    %s25 = sphi 0, %s24
    %s41 = sphi 0, %s25
    %s45 = sphi 0, %s45
    %s47 = sphi 0, %s45
    %s48 = sphi 0, %s47
    %s62 = sphi 0, %s48
    %s66 = sphi 0, %s66
    %s68 = sphi 0, %s66
    %s69 = sphi 0, %s68
    %s83 = sphi 0, %s69
    %s89 = sphi 0, %s91
    %s92 = sphi 0, %s89
    %s93 = sphi 0, %s92
    %s109 = sphi 0, %s93
    %s115 = sphi 0, %s117
    %s118 = sphi 0, %s115
    %s119 = sphi 0, %s118
    %s135 = sphi 0, %s119
  $region4: #{_forward_impl.6} parent=0 // loop_header_branch
    %14 = sbr.rel (%p12) target = $region8
  $region5: #{_forward_impl.6} parent=0 // loop_body
    %s16 = ssub.s32 %s11, 1
    %s17 = ssub.s32 %s11, 2
    %s18 = sadd.s32 %s11, 1
    %s19 = ssub.s32 %s11, %s18
    %p20 = scmp.eq.s32.totalorder %s19, 0
    %s22 = sadd.s32 %s21, 1
    %s23 = scalar_select %p20, %s21, %s22
    %p26 = pneg %p20
    %p27 = scmp.eq.s32.totalorder %s11, 1
    %p28 = por %p26, %p27
    %p29 = scmp.ne.s32.totalorder %s21, %s24
    %p30 = scmp.eq.s32.totalorder %s11, 0
    %p31 = por %p29, %p30
    %p32 = scmp.ne.s32.totalorder %s21, %s24
    %p33 = scmp.eq.s32.totalorder %s16, 1
    %p34 = por %p32, %p33
    %p35 = scmp.ne.s32.totalorder %s24, %s25
    %p36 = scmp.eq.s32.totalorder %s16, 0
    %p37 = por %p35, %p36
    %p38 = scmp.ne.s32.totalorder %s24, %s25
    %p39 = scmp.eq.s32.totalorder %s17, 1
    %p40 = por %p38, %p39
    %p42 = scmp.ne.s32.totalorder %s25, %s41
    %p43 = scmp.eq.s32.totalorder %s17, 0
    %p44 = por %p42, %p43
    %s46 = sadd.s32 %s45, 1
    %p49 = scmp.eq.s32.totalorder %s11, 1
    %p50 = scmp.ne.s32.totalorder %s45, %s47
    %p51 = scmp.eq.s32.totalorder %s11, 0
    %p52 = por %p50, %p51
    %p53 = scmp.ne.s32.totalorder %s45, %s47
    %p54 = scmp.eq.s32.totalorder %s16, 1
    %p55 = por %p53, %p54
    %p56 = scmp.ne.s32.totalorder %s47, %s48
    %p57 = scmp.eq.s32.totalorder %s16, 0
    %p58 = por %p56, %p57
    %p59 = scmp.ne.s32.totalorder %s47, %s48
    %p60 = scmp.eq.s32.totalorder %s17, 1
    %p61 = por %p59, %p60
    %p63 = scmp.ne.s32.totalorder %s48, %s62
    %p64 = scmp.eq.s32.totalorder %s17, 0
    %p65 = por %p63, %p64
    %s67 = sadd.s32 %s66, 1
    %p70 = scmp.eq.s32.totalorder %s11, 1
    %p71 = scmp.ne.s32.totalorder %s66, %s68
    %p72 = scmp.eq.s32.totalorder %s11, 0
    %p73 = por %p71, %p72
    %p74 = scmp.ne.s32.totalorder %s66, %s68
    %p75 = scmp.eq.s32.totalorder %s16, 1
    %p76 = por %p74, %p75
    %p77 = scmp.ne.s32.totalorder %s68, %s69
    %p78 = scmp.eq.s32.totalorder %s16, 0
    %p79 = por %p77, %p78
    %p80 = scmp.ne.s32.totalorder %s68, %s69
    %p81 = scmp.eq.s32.totalorder %s17, 1
    %p82 = por %p80, %p81
    %p84 = scmp.ne.s32.totalorder %s69, %s83
    %p85 = scmp.eq.s32.totalorder %s17, 0
    %p86 = por %p84, %p85
    %s87 = ssub.s32 %s11, %s18
    %p88 = scmp.eq.s32.totalorder %s87, 0
    %s90 = sadd.s32 %s89, 1
    %s91 = scalar_select %p88, %s89, %s90
    %p94 = pneg %p88
    %p95 = scmp.eq.s32.totalorder %s11, 1
    %p96 = por %p94, %p95
    %p97 = scmp.ne.s32.totalorder %s89, %s92
    %p98 = scmp.eq.s32.totalorder %s11, 0
    %p99 = por %p97, %p98
    %p100 = scmp.ne.s32.totalorder %s89, %s92
    %p101 = scmp.eq.s32.totalorder %s16, 1
    %p102 = por %p100, %p101
    %p103 = scmp.ne.s32.totalorder %s92, %s93
    %p104 = scmp.eq.s32.totalorder %s16, 0
    %p105 = por %p103, %p104
    %p106 = scmp.ne.s32.totalorder %s92, %s93
    %p107 = scmp.eq.s32.totalorder %s17, 1
    %p108 = por %p106, %p107
    %p110 = scmp.ne.s32.totalorder %s93, %s109
    %p111 = scmp.eq.s32.totalorder %s17, 0
    %p112 = por %p110, %p111
    %s113 = ssub.s32 %s11, %s18
    %p114 = scmp.eq.s32.totalorder %s113, 0
    %s116 = sadd.s32 %s115, 1
    %s117 = scalar_select %p114, %s115, %s116
    %p120 = pneg %p114
    %p121 = scmp.eq.s32.totalorder %s11, 1
    %p122 = por %p120, %p121
    %p123 = scmp.ne.s32.totalorder %s115, %s118
    %p124 = scmp.eq.s32.totalorder %s11, 0
    %p125 = por %p123, %p124
    %p126 = scmp.ne.s32.totalorder %s115, %s118
    %p127 = scmp.eq.s32.totalorder %s16, 1
    %p128 = por %p126, %p127
    %p129 = scmp.ne.s32.totalorder %s118, %s119
    %p130 = scmp.eq.s32.totalorder %s16, 0
    %p131 = por %p129, %p130
    %p132 = scmp.ne.s32.totalorder %s118, %s119
    %p133 = scmp.eq.s32.totalorder %s17, 1
    %p134 = por %p132, %p133
    %p136 = scmp.ne.s32.totalorder %s119, %s135
    %p137 = scmp.eq.s32.totalorder %s17, 0
    %p138 = por %p136, %p137
    %p139 = scmp.le.s32.totalorder 1, %s11
    %p140 = scmp.lt.s32.totalorder %s11, 3
    %p141 = pnand %p139, %p140
    %p142 = pneg %p141
    // Predicated region
    $region9: #{_forward_impl.6} parent=5 // pred_check
      _
    $region10: #{_forward_impl.6} parent=5 // pred_check_branch
      %144 = sbr.rel (%p141) target = $region12
    $region11: #{_forward_impl.6} parent=5 // pred_region
      %s145 = ssub.s32 %s11, 1
      // Predicated region
      $region13: #{_forward_impl.6} parent=11 // pred_check
        %p146 = pneg %p58
      $region14: #{_forward_impl.6} parent=11 // pred_check_branch
        %148 = sbr.rel (%p146) target = $region16
      $region15: #{_forward_impl.6} parent=11 // pred_region
        _
      $region16: #{_forward_impl.6} parent=11 // pred_fallthru
        _
      // Predicated region
      $region17: #{_forward_impl.6} parent=11 // pred_check
        %p149 = pneg %p79
      $region18: #{_forward_impl.6} parent=11 // pred_check_branch
        %151 = sbr.rel (%p149) target = $region20
      $region19: #{_forward_impl.6} parent=11 // pred_region
        _
      $region20: #{_forward_impl.6} parent=11 // pred_fallthru
        _
    $region12: #{_forward_impl.6} parent=5 // pred_fallthru
      _
    %p152 = scmp.lt.s32.totalorder %s11, 2
    // Predicated region
    $region21: #{_forward_impl.6} parent=5 // pred_check
      %p153 = pneg %p152
    $region22: #{_forward_impl.6} parent=5 // pred_check_branch
      %155 = sbr.rel (%p153) target = $region24
    $region23: #{_forward_impl.6} parent=5 // pred_region
      // Predicated region
      $region25: #{_forward_impl.6} parent=23 // pred_check
        %p156 = pneg %p31
      $region26: #{_forward_impl.6} parent=23 // pred_check_branch
        %158 = sbr.rel (%p156) target = $region28
      $region27: #{_forward_impl.6} parent=23 // pred_region
        %p159 = scmp.lt.s32.totalorder %s11, 1
        %s160 = scalar_select %p159, %s11, 1
        %s161 = smul.addr %s160, 9
        %s162 = smul.addr %s161, 8
        %s163 = scalar_lea.vmem %s0, %s162
      $region28: #{_forward_impl.6} parent=23 // pred_fallthru
        _
    $region24: #{_forward_impl.6} parent=5 // pred_fallthru
      _
    %p164 = scmp.le.s32.totalorder 1, %s11
    %p165 = scmp.lt.s32.totalorder %s11, 3
    %p166 = pnand %p164, %p165
    %p167 = pneg %p166
    // Predicated region
    $region29: #{_forward_impl.6} parent=5 // pred_check
      _
    $region30: #{_forward_impl.6} parent=5 // pred_check_branch
      %169 = sbr.rel (%p166) target = $region32
    $region31: #{_forward_impl.6} parent=5 // pred_region
      %s170 = ssub.s32 %s11, 1
      %p171 = scmp.lt.s32.totalorder %s16, 1
      %s172 = scalar_select %p171, %s16, 1
      %s173 = smul.addr %s172, 9
      %s174 = smul.addr %s173, 8
      %s175 = scalar_lea.vmem %s0, %s174
      %p176 = pneg %p37
      %p177 = pneg %p34
      %p178 = pneg %p58
      %p179 = pneg %p55
      %p180 = pneg %p79
      %p181 = pneg %p76
      %p182 = pneg %p105
      %p183 = pneg %p102
      %p184 = scmp.lt.s32.totalorder %s16, 1
      %s185 = scalar_select %p184, %s16, 1
      %s186 = smul.addr %s185, 2
      %s187 = smul.addr %s186, 8
      %s188 = scalar_lea.vmem %s3, %s187
      %p189 = pneg %p131
      %p190 = pneg %p128
      %p191 = scmp.lt.s32.totalorder %s16, 1
      %s192 = scalar_select %p191, %s16, 1
      %s193 = smul.addr %s192, 2
      %s194 = smul.addr %s193, 8
      %s195 = scalar_lea.vmem %s4, %s194
      %p196 = scmp.lt.s32.totalorder %s16, 1
      %s197 = scalar_select %p196, %s16, 1
      %s198 = smul.addr %s197, 9
      %s199 = smul.addr %s198, 8
      %s200 = scalar_lea.vmem %s0, %s199
      %p201 = scmp.lt.s32.totalorder %s16, 1
      %s202 = scalar_select %p201, %s16, 1
      %s203 = smul.addr %s202, 2
      %s204 = smul.addr %s203, 8
      %s205 = scalar_lea.vmem %s3, %s204
      %p206 = scmp.lt.s32.totalorder %s16, 1
      %s207 = scalar_select %p206, %s16, 1
      %s208 = smul.addr %s207, 2
      %s209 = smul.addr %s208, 8
      %s210 = scalar_lea.vmem %s4, %s209
      %v211 = vld [vmem:[%s200] sm:$0xff]
      %v212 = vld [vmem:[%s200 + $0x8] sm:$0xff]
      %v213 = vld [vmem:[%s200 + $0x10] sm:$0xff]
      %v214 = vld [vmem:[%s200 + $0x18] sm:$0xff]
      %v215 = vld [vmem:[%s200 + $0x20] sm:$0xff]
      %v216 = vld [vmem:[%s200 + $0x28] sm:$0xff]
      %v217 = vld [vmem:[%s200 + $0x30] sm:$0xff]
      %v218 = vld [vmem:[%s200 + $0x38] sm:$0xff]
      %v219 = vld [vmem:[%s200 + $0x40] sm:$0xff]
      %v220 = vld [vmem:[%s1] sm:$0xff]
      %v221 = vld [vmem:[%s1 + $0x8] sm:$0xff]
      %v222 = vld [vmem:[%s2] sm:$0xff]
      %v223 = vld [vmem:[%s2 + $0x8] sm:$0xff]
      %225 = vset.pattern.permute.xlu0 0
      %226 = vperm.xlu0 %225, %v222
      %v227 = vpop.permute.xlu0 %226
      %230 = vset.pattern.permute.xlu0 0
      %231 = vperm.xlu0 %230, %v223
      %v232 = vpop.permute.xlu0 %231
      %vm234 = vcmask 588800
      %v236 = vsel %vm234, %v220, 0
      %v239 = vsel %vm234, %v221, 0
      %241 = vmatprep.subr.mxu0 0.0
      %242 = vmatpush1.msra.mxu0 0.0
      %243 = vmatprep.subr.mxu0 0.0
      %244 = vmatpush1.msra.mxu0 0.0
      %245 = vmatprep.subr.mxu0 0.0
      %246 = vmatpush1.msra.mxu0 0.0
      %247 = vmatprep.subr.mxu0 0.0
      %248 = vmatpush1.msra.mxu0 0.0
      %249 = vmatprep.subr.mxu0 0.0
      %250 = vmatpush1.msra.mxu0 0.0
      %251 = vmatprep.subr.mxu0 0.0
      %252 = vmatpush1.msra.mxu0 0.0
      %253 = vmatprep.subr.mxu0 0.0
      %254 = vmatpush1.msra.mxu0 0.0
      %255 = vmatprep.subr.mxu0 0.0
      %256 = vmatpush1.msra.mxu0 %v219
      %257 = vmatprep.subr.mxu0 0.0
      %258 = vmatpush1.msra.mxu0 %v218
      %259 = vmatprep.subr.mxu0 0.0
      %260 = vmatpush1.msra.mxu0 %v217
      %261 = vmatprep.subr.mxu0 0.0
      %262 = vmatpush1.msra.mxu0 %v216
      %263 = vmatprep.subr.mxu0 0.0
      %264 = vmatpush1.msra.mxu0 %v215
      %265 = vmatprep.subr.mxu0 0.0
      %266 = vmatpush1.msra.mxu0 %v214
      %267 = vmatprep.subr.mxu0 0.0
      %268 = vmatpush1.msra.mxu0 %v213
      %269 = vmatprep.subr.mxu0 0.0
      %270 = vmatpush1.msra.mxu0 %v212
      %271 = vmatprep.subr.mxu0 0.0
      %272 = vmatpush1.msra.mxu0 %v211
      %273 = vmatprep.subr.mxu0 0.0
      %274 = vmatpush2.msra.mxu0 0.0
      %275 = vmatprep.subr.mxu0 0.0
      %276 = vmatpush2.msra.mxu0 0.0
      %277 = vmatprep.subr.mxu0 0.0
      %278 = vmatpush2.msra.mxu0 0.0
      %279 = vmatprep.subr.mxu0 0.0
      %280 = vmatpush2.msra.mxu0 0.0
      %281 = vmatprep.subr.mxu0 0.0
      %282 = vmatpush2.msra.mxu0 0.0
      %283 = vmatprep.subr.mxu0 0.0
      %284 = vmatpush2.msra.mxu0 0.0
      %285 = vmatprep.subr.mxu0 0.0
      %286 = vmatpush2.msra.mxu0 0.0
      %287 = vmatprep.subr.mxu0 0.0
      %288 = vmatpush2.msra.mxu0 0.0
      %289 = vmatprep.subr.mxu0 0.0
      %290 = vmatpush2.msra.mxu0 0.0
      %291 = vmatprep.subr.mxu0 0.0
      %292 = vmatpush2.msra.mxu0 0.0
      %293 = vmatprep.subr.mxu0 0.0
      %294 = vmatpush2.msra.mxu0 0.0
      %295 = vmatprep.subr.mxu0 0.0
      %296 = vmatpush2.msra.mxu0 0.0
      %297 = vmatprep.subr.mxu0 0.0
      %298 = vmatpush2.msra.mxu0 0.0
      %299 = vmatprep.subr.mxu0 0.0
      %300 = vmatpush2.msra.mxu0 0.0
      %301 = vmatprep.subr.mxu0 0.0
      %302 = vmatpush2.msra.mxu0 0.0
      %303 = vmatprep.subr.mxu0 0.0
      %304 = vmatpush2.msra.mxu0 0.0
      %305 = vmatprep.mubr.f32.mxu0 0.0
      %306 = vmatmul.mubr.f32.gmra.mxu0 %v236
      %v307 = vpop.f32.mrf.mxu0
      %v308 = vadd.f32 %v227, %v307
      %v309 = vpop.f32.mrf.mxu0
      %310 = vmatprep.mubr.f32.mxu0 0.0
      %311 = vmatmul.mubr.f32.gmra.mxu0 %v239
      %v312 = vpop.f32.mrf.mxu0
      %v313 = vadd.f32 %v232, %v312
      %v314 = vpop.f32.mrf.mxu0
      %315 = vdwg.mxu0
      %v316 = vmax.f32 %v308, 0.0
      %v317 = vmax.f32 %v313, 0.0
      %vm318 = vcmask 523264
      %319 = vst.msk [vmem:[%s205] sm:$0xff] %vm318, %v316
      %320 = vst.msk [vmem:[%s205 + $0x8] sm:$0xff] %vm318, %v317
      %v321 = vlaneseq
      %v322 = vand.u32 %v321, 127
      %vm323 = vcmp.lt.s32.totalorder %v322, 0
      %v324 = vsub.s32 0, %v322
      %v325 = vsel %vm323, %v324, %v322
      %v326 = vshrl.u32 %v325, 3
      %v327 = vand.u32 %v325, 7
      %v328 = vsub.s32 0, %v327
      %v329 = vsel %vm323, %v328, %v327
      %vm330 = vcmp.ne.s32.totalorder %v329, 0
      %vm331 = vcmp.lt.s32.totalorder %v329, 0
      %vm332 = vmand %vm331, %vm330
      %v333 = vadd.s32 %v329, 8
      %v334 = vsel %vm332, %v333, %v329
      %vm335 = vcmp.gt.s32.totalorder %v334, 0
      %vm336 = vcmp.lt.s32.totalorder %v334, 7
      %339 = vrot.lane.b32.xlu0 %v316, 9
      %v340 = vpop.permute.xlu0 %339
      %341 = vrot.lane.b32.xlu0 %v317, 9
      %v342 = vpop.permute.xlu0 %341
      %vm345 = vcmask 72704
      %v346 = vsel %vm345, 0.0, %v340
      %v347 = vsel %vm345, 0.0, %v342
      %v348 = vsel %vm335, %v346, 0.0
      %v349 = vsel %vm335, %v347, 0.0
      %350 = vrot.lane.b32.xlu0 %v316, 8
      %v351 = vpop.permute.xlu0 %350
      %352 = vrot.lane.b32.xlu0 %v317, 8
      %v353 = vpop.permute.xlu0 %352
      %vm356 = vcmask 64512
      %v357 = vsel %vm356, 0.0, %v351
      %v358 = vsel %vm356, 0.0, %v353
      %359 = vrot.lane.b32.xlu0 %v316, 7
      %v360 = vpop.permute.xlu0 %359
      %361 = vrot.lane.b32.xlu0 %v317, 7
      %v362 = vpop.permute.xlu0 %361
      %vm365 = vcmask 56320
      %v366 = vsel %vm365, 0.0, %v360
      %v367 = vsel %vm365, 0.0, %v362
      %v368 = vsel %vm336, %v366, 0.0
      %v369 = vsel %vm336, %v367, 0.0
      %370 = vrot.lane.b32.xlu0 %v316, 1
      %v371 = vpop.permute.xlu0 %370
      %372 = vrot.lane.b32.xlu0 %v317, 1
      %v373 = vpop.permute.xlu0 %372
      %vm376 = vcmask 7168
      %v377 = vsel %vm376, 0.0, %v371
      %v378 = vsel %vm376, 0.0, %v373
      %v379 = vsel %vm335, %v377, 0.0
      %v380 = vsel %vm335, %v378, 0.0
      %381 = vrot.lane.b32.xlu0 %v316, 127
      %v382 = vpop.permute.xlu0 %381
      %383 = vrot.lane.b32.xlu0 %v317, 127
      %v384 = vpop.permute.xlu0 %383
      %vm387 = vcmask 515072
      %v388 = vsel %vm387, %v382, 0.0
      %v389 = vsel %vm387, %v384, 0.0
      %v390 = vsel %vm336, %v388, 0.0
      %v391 = vsel %vm336, %v389, 0.0
      %392 = vrot.lane.b32.xlu0 %v316, 121
      %v393 = vpop.permute.xlu0 %392
      %394 = vrot.lane.b32.xlu0 %v317, 121
      %v395 = vpop.permute.xlu0 %394
      %vm398 = vcmask 465920
      %v399 = vsel %vm398, %v393, 0.0
      %v400 = vsel %vm398, %v395, 0.0
      %v401 = vsel %vm335, %v399, 0.0
      %v402 = vsel %vm335, %v400, 0.0
      %403 = vrot.lane.b32.xlu0 %v316, 120
      %v404 = vpop.permute.xlu0 %403
      %405 = vrot.lane.b32.xlu0 %v317, 120
      %v406 = vpop.permute.xlu0 %405
      %vm409 = vcmask 457728
      %v410 = vsel %vm409, %v404, 0.0
      %v411 = vsel %vm409, %v406, 0.0
      %412 = vrot.lane.b32.xlu0 %v316, 119
      %v413 = vpop.permute.xlu0 %412
      %414 = vrot.lane.b32.xlu0 %v317, 119
      %v415 = vpop.permute.xlu0 %414
      %vm418 = vcmask 449536
      %v419 = vsel %vm418, %v413, 0.0
      %v420 = vsel %vm418, %v415, 0.0
      %v421 = vsel %vm336, %v419, 0.0
      %v422 = vsel %vm336, %v420, 0.0
      %v423 = vadd.f32 %v348, 0.0
      %v424 = vadd.f32 %v349, 0.0
      %v425 = vadd.f32 %v423, %v357
      %v426 = vadd.f32 %v424, %v358
      %v427 = vadd.f32 %v425, %v368
      %v428 = vadd.f32 %v426, %v369
      %v429 = vadd.f32 %v427, %v379
      %v430 = vadd.f32 %v428, %v380
      %v431 = vadd.f32 %v429, %v316
      %v432 = vadd.f32 %v430, %v317
      %v433 = vadd.f32 %v431, %v390
      %v434 = vadd.f32 %v432, %v391
      %v435 = vadd.f32 %v433, %v401
      %v436 = vadd.f32 %v434, %v402
      %v437 = vadd.f32 %v435, %v410
      %v438 = vadd.f32 %v436, %v411
      %v439 = vadd.f32 %v437, %v421
      %v440 = vadd.f32 %v438, %v422
      %v441 = vmul.f32 %v439, 0.11111111
      %v442 = vmul.f32 %v440, 0.11111111
      %443 = vst.msk [vmem:[%s210] sm:$0xff] %vm318, %v441
      %444 = vst.msk [vmem:[%s210 + $0x8] sm:$0xff] %vm318, %v442
      %p445 = scmp.lt.s32.totalorder %s16, 1
      %s446 = scalar_select %p445, %s16, 1
      %s447 = smul.addr %s446, 2
      %s448 = smul.addr %s447, 8
      %s449 = scalar_lea.vmem %s3, %s448
      %p450 = scmp.lt.s32.totalorder %s16, 1
      %s451 = scalar_select %p450, %s16, 1
      %s452 = smul.addr %s451, 2
      %s453 = smul.addr %s452, 8
      %s454 = scalar_lea.vmem %s4, %s453
      // Predicated region
      $region33: #{_forward_impl.6} parent=31 // pred_check
        %p455 = pneg %p102
      $region34: #{_forward_impl.6} parent=31 // pred_check_branch
        %457 = sbr.rel (%p455) target = $region36
      $region35: #{_forward_impl.6} parent=31 // pred_region
        _
      $region36: #{_forward_impl.6} parent=31 // pred_fallthru
        _
      // Predicated region
      $region37: #{_forward_impl.6} parent=31 // pred_check
        %p458 = pneg %p128
      $region38: #{_forward_impl.6} parent=31 // pred_check_branch
        %460 = sbr.rel (%p458) target = $region40
      $region39: #{_forward_impl.6} parent=31 // pred_region
        _
      $region40: #{_forward_impl.6} parent=31 // pred_fallthru
        _
    $region32: #{_forward_impl.6} parent=5 // pred_fallthru
      _
    %p461 = scmp.le.s32.totalorder 2, %s11
    // Predicated region
    $region41: #{_forward_impl.6} parent=5 // pred_check
      %p462 = pneg %p461
    $region42: #{_forward_impl.6} parent=5 // pred_check_branch
      %464 = sbr.rel (%p462) target = $region44
    $region43: #{_forward_impl.6} parent=5 // pred_region
      %s465 = ssub.s32 %s11, 2
      // Predicated region
      $region45: #{_forward_impl.6} parent=43 // pred_check
        %p466 = pneg %p108
      $region46: #{_forward_impl.6} parent=43 // pred_check_branch
        %468 = sbr.rel (%p466) target = $region48
      $region47: #{_forward_impl.6} parent=43 // pred_region
        %p469 = scmp.lt.s32.totalorder %s17, 1
        %s470 = scalar_select %p469, %s17, 1
        %s471 = smul.addr %s470, 2
        %s472 = smul.addr %s471, 8
        %s473 = scalar_lea.vmem %s3, %s472
      $region48: #{_forward_impl.6} parent=43 // pred_fallthru
        _
      // Predicated region
      $region49: #{_forward_impl.6} parent=43 // pred_check
        %p474 = pneg %p134
      $region50: #{_forward_impl.6} parent=43 // pred_check_branch
        %476 = sbr.rel (%p474) target = $region52
      $region51: #{_forward_impl.6} parent=43 // pred_region
        %p477 = scmp.lt.s32.totalorder %s17, 1
        %s478 = scalar_select %p477, %s17, 1
        %s479 = smul.addr %s478, 2
        %s480 = smul.addr %s479, 8
        %s481 = scalar_lea.vmem %s4, %s480
      $region52: #{_forward_impl.6} parent=43 // pred_fallthru
        _
    $region44: #{_forward_impl.6} parent=5 // pred_fallthru
      _
  $region6: #{_forward_impl.6} parent=0 // loop_footer
    %s15 = sadd.s32 1, %s11
  $region7: #{_forward_impl.6} parent=0 // loop_footer_branch
    %10 = sbr.rel target = $region3
  $region8: #{_forward_impl.6} parent=0 // loop_exit
    _

// kernel: _forward_impl.7
$region0: #{_forward_impl.7}
  #allocation0 [shape = 'u32[]', space=smem, size = 0x4, offset = 0x4, fixed_abs, tag = 'smem constant byte address 0x4 - core index']
  #allocation1 [shape = 'u32[144,128]{1,0:T(1,128)}', space=vmem, size = 0x12000, scoped, tag = 'internal scratch']
  %s0 = inlined_call_operand.vmem [shape: f32[2,144,16], index: 0, kind: input, shape index: {}]
  %s1 = inlined_call_operand.vmem [shape: f32[32,144], index: 1, kind: input, shape index: {}]
  %s2 = inlined_call_operand.vmem [shape: f32[32,1], index: 2, kind: input, shape index: {}]
  %s3 = inlined_call_operand.hbm [shape: f32[2,32,16], index: 3, kind: output, shape index: {0}]
  %s4 = inlined_call_operand.vmem [shape: f32[2,32,16], index: 4, kind: output, shape index: {1}]
  %5 = xla_tuple %s3, %s4
  %s6 = sld [smem:[#allocation0]]
  $region53: #{_forward_impl.7} parent=0
    _
  %s8 = ssub.s32 1, %s6
  %s9 = scalar_select 0, %s8, %s6
  $region1: #{_forward_impl.7} parent=0
    #allocation2 [shape = 'u8[32768]{0}', space=vmem, size = 0x8000, scoped, tag = 'output window, operand 0']
    #allocation3 [shape = 's32[2]{0}', space=sflag, size = 0x8, scoped, tag = 'scoped memory for _forward_impl.7']
    %10 = vsyncpa [#allocation3], 0
    %s11 = scalar_lea.sflag [#allocation3], 1
    %12 = vsyncpa %s11, 0
    loop: start=0, step=1, limit=4
    $region2: #{_forward_impl.7} parent=1 // loop_pre_header
      _
    $region3: #{_forward_impl.7} parent=1 // loop_header
      %s14 = sphi 0, %s18
      %p15 = scmp.ge.s32.totalorder %s14, 4
      %s24 = sphi 0, %s26
      %s27 = sphi 0, %s24
      %s28 = sphi 0, %s27
      %s44 = sphi 0, %s28
      %s48 = sphi 0, %s48
      %s50 = sphi 0, %s48
      %s51 = sphi 0, %s50
      %s65 = sphi 0, %s51
      %s69 = sphi 0, %s69
      %s71 = sphi 0, %s69
      %s72 = sphi 0, %s71
      %s86 = sphi 0, %s72
      %s92 = sphi 0, %s94
      %s95 = sphi 0, %s92
      %s96 = sphi 0, %s95
      %s112 = sphi 0, %s96
      %s118 = sphi 0, %s120
      %s121 = sphi 0, %s118
      %s122 = sphi 0, %s121
      %s138 = sphi 0, %s122
    $region4: #{_forward_impl.7} parent=1 // loop_header_branch
      %17 = sbr.rel (%p15) target = $region8
    $region5: #{_forward_impl.7} parent=1 // loop_body
      %s19 = ssub.s32 %s14, 1
      %s20 = ssub.s32 %s14, 2
      %s21 = sadd.s32 %s14, 1
      %s22 = ssub.s32 %s14, %s21
      %p23 = scmp.eq.s32.totalorder %s22, 0
      %s25 = sadd.s32 %s24, 1
      %s26 = scalar_select %p23, %s24, %s25
      %p29 = pneg %p23
      %p30 = scmp.eq.s32.totalorder %s14, 1
      %p31 = por %p29, %p30
      %p32 = scmp.ne.s32.totalorder %s24, %s27
      %p33 = scmp.eq.s32.totalorder %s14, 0
      %p34 = por %p32, %p33
      %p35 = scmp.ne.s32.totalorder %s24, %s27
      %p36 = scmp.eq.s32.totalorder %s19, 1
      %p37 = por %p35, %p36
      %p38 = scmp.ne.s32.totalorder %s27, %s28
      %p39 = scmp.eq.s32.totalorder %s19, 0
      %p40 = por %p38, %p39
      %p41 = scmp.ne.s32.totalorder %s27, %s28
      %p42 = scmp.eq.s32.totalorder %s20, 1
      %p43 = por %p41, %p42
      %p45 = scmp.ne.s32.totalorder %s28, %s44
      %p46 = scmp.eq.s32.totalorder %s20, 0
      %p47 = por %p45, %p46
      %s49 = sadd.s32 %s48, 1
      %p52 = scmp.eq.s32.totalorder %s14, 1
      %p53 = scmp.ne.s32.totalorder %s48, %s50
      %p54 = scmp.eq.s32.totalorder %s14, 0
      %p55 = por %p53, %p54
      %p56 = scmp.ne.s32.totalorder %s48, %s50
      %p57 = scmp.eq.s32.totalorder %s19, 1
      %p58 = por %p56, %p57
      %p59 = scmp.ne.s32.totalorder %s50, %s51
      %p60 = scmp.eq.s32.totalorder %s19, 0
      %p61 = por %p59, %p60
      %p62 = scmp.ne.s32.totalorder %s50, %s51
      %p63 = scmp.eq.s32.totalorder %s20, 1
      %p64 = por %p62, %p63
      %p66 = scmp.ne.s32.totalorder %s51, %s65
      %p67 = scmp.eq.s32.totalorder %s20, 0
      %p68 = por %p66, %p67
      %s70 = sadd.s32 %s69, 1
      %p73 = scmp.eq.s32.totalorder %s14, 1
      %p74 = scmp.ne.s32.totalorder %s69, %s71
      %p75 = scmp.eq.s32.totalorder %s14, 0
      %p76 = por %p74, %p75
      %p77 = scmp.ne.s32.totalorder %s69, %s71
      %p78 = scmp.eq.s32.totalorder %s19, 1
      %p79 = por %p77, %p78
      %p80 = scmp.ne.s32.totalorder %s71, %s72
      %p81 = scmp.eq.s32.totalorder %s19, 0
      %p82 = por %p80, %p81
      %p83 = scmp.ne.s32.totalorder %s71, %s72
      %p84 = scmp.eq.s32.totalorder %s20, 1
      %p85 = por %p83, %p84
      %p87 = scmp.ne.s32.totalorder %s72, %s86
      %p88 = scmp.eq.s32.totalorder %s20, 0
      %p89 = por %p87, %p88
      %s90 = ssub.s32 %s14, %s21
      %p91 = scmp.eq.s32.totalorder %s90, 0
      %s93 = sadd.s32 %s92, 1
      %s94 = scalar_select %p91, %s92, %s93
      %p97 = pneg %p91
      %p98 = scmp.eq.s32.totalorder %s14, 1
      %p99 = por %p97, %p98
      %p100 = scmp.ne.s32.totalorder %s92, %s95
      %p101 = scmp.eq.s32.totalorder %s14, 0
      %p102 = por %p100, %p101
      %p103 = scmp.ne.s32.totalorder %s92, %s95
      %p104 = scmp.eq.s32.totalorder %s19, 1
      %p105 = por %p103, %p104
      %p106 = scmp.ne.s32.totalorder %s95, %s96
      %p107 = scmp.eq.s32.totalorder %s19, 0
      %p108 = por %p106, %p107
      %p109 = scmp.ne.s32.totalorder %s95, %s96
      %p110 = scmp.eq.s32.totalorder %s20, 1
      %p111 = por %p109, %p110
      %p113 = scmp.ne.s32.totalorder %s96, %s112
      %p114 = scmp.eq.s32.totalorder %s20, 0
      %p115 = por %p113, %p114
      %s116 = ssub.s32 %s14, %s21
      %p117 = scmp.eq.s32.totalorder %s116, 0
      %s119 = sadd.s32 %s118, 1
      %s120 = scalar_select %p117, %s118, %s119
      %p123 = pneg %p117
      %p124 = scmp.eq.s32.totalorder %s14, 1
      %p125 = por %p123, %p124
      %p126 = scmp.ne.s32.totalorder %s118, %s121
      %p127 = scmp.eq.s32.totalorder %s14, 0
      %p128 = por %p126, %p127
      %p129 = scmp.ne.s32.totalorder %s118, %s121
      %p130 = scmp.eq.s32.totalorder %s19, 1
      %p131 = por %p129, %p130
      %p132 = scmp.ne.s32.totalorder %s121, %s122
      %p133 = scmp.eq.s32.totalorder %s19, 0
      %p134 = por %p132, %p133
      %p135 = scmp.ne.s32.totalorder %s121, %s122
      %p136 = scmp.eq.s32.totalorder %s20, 1
      %p137 = por %p135, %p136
      %p139 = scmp.ne.s32.totalorder %s122, %s138
      %p140 = scmp.eq.s32.totalorder %s20, 0
      %p141 = por %p139, %p140
      %p142 = scmp.le.s32.totalorder 1, %s14
      %p143 = scmp.lt.s32.totalorder %s14, 3
      %p144 = pnand %p142, %p143
      %p145 = pneg %p144
      // Predicated region
      $region9: #{_forward_impl.7} parent=5 // pred_check
        _
      $region10: #{_forward_impl.7} parent=5 // pred_check_branch
        %147 = sbr.rel (%p144) target = $region12
      $region11: #{_forward_impl.7} parent=5 // pred_region
        %s148 = ssub.s32 %s14, 1
        // Predicated region
        $region13: #{_forward_impl.7} parent=11 // pred_check
          %p149 = pneg %p61
        $region14: #{_forward_impl.7} parent=11 // pred_check_branch
          %151 = sbr.rel (%p149) target = $region16
        $region15: #{_forward_impl.7} parent=11 // pred_region
          _
        $region16: #{_forward_impl.7} parent=11 // pred_fallthru
          _
        // Predicated region
        $region17: #{_forward_impl.7} parent=11 // pred_check
          %p152 = pneg %p82
        $region18: #{_forward_impl.7} parent=11 // pred_check_branch
          %154 = sbr.rel (%p152) target = $region20
        $region19: #{_forward_impl.7} parent=11 // pred_region
          _
        $region20: #{_forward_impl.7} parent=11 // pred_fallthru
          _
      $region12: #{_forward_impl.7} parent=5 // pred_fallthru
        _
      %p155 = scmp.lt.s32.totalorder %s14, 2
      // Predicated region
      $region21: #{_forward_impl.7} parent=5 // pred_check
        %p156 = pneg %p155
      $region22: #{_forward_impl.7} parent=5 // pred_check_branch
        %158 = sbr.rel (%p156) target = $region24
      $region23: #{_forward_impl.7} parent=5 // pred_region
        // Predicated region
        $region25: #{_forward_impl.7} parent=23 // pred_check
          %p159 = pneg %p34
        $region26: #{_forward_impl.7} parent=23 // pred_check_branch
          %161 = sbr.rel (%p159) target = $region28
        $region27: #{_forward_impl.7} parent=23 // pred_region
          %p162 = scmp.lt.s32.totalorder %s14, 1
          %s163 = scalar_select %p162, %s14, 1
          %s164 = smul.addr %s163, 18
          %s165 = smul.addr %s164, 8
          %s166 = scalar_lea.vmem %s0, %s165
        $region28: #{_forward_impl.7} parent=23 // pred_fallthru
          _
      $region24: #{_forward_impl.7} parent=5 // pred_fallthru
        _
      %p167 = scmp.le.s32.totalorder 1, %s14
      %p168 = scmp.lt.s32.totalorder %s14, 3
      %p169 = pnand %p167, %p168
      %p170 = pneg %p169
      // Predicated region
      $region29: #{_forward_impl.7} parent=5 // pred_check
        _
      $region30: #{_forward_impl.7} parent=5 // pred_check_branch
        %172 = sbr.rel (%p169) target = $region32
      $region31: #{_forward_impl.7} parent=5 // pred_region
        %s173 = ssub.s32 %s14, 1
        %p174 = scmp.lt.s32.totalorder %s19, 1
        %s175 = scalar_select %p174, %s19, 1
        %s176 = smul.addr %s175, 18
        %s177 = smul.addr %s176, 8
        %s178 = scalar_lea.vmem %s0, %s177
        %p179 = pneg %p40
        %p180 = pneg %p37
        %p181 = pneg %p61
        %p182 = pneg %p58
        %p183 = pneg %p82
        %p184 = pneg %p79
        %p185 = pneg %p108
        %p186 = pneg %p105
        %s187 = sand.u32 %s95, 1
        %s188 = scalar_lea.sflag [#allocation3], %s187
        %s189 = sand.u32 %s95, 1
        %s190 = smul.addr %s189, 32
        %s191 = scalar_lea.vmem [#allocation2], %s190
        %p192 = pneg %p134
        %p193 = pneg %p131
        %p194 = scmp.lt.s32.totalorder %s19, 1
        %s195 = scalar_select %p194, %s19, 1
        %s196 = smul.addr %s195, 4
        %s197 = smul.addr %s196, 8
        %s198 = scalar_lea.vmem %s4, %s197
        %p199 = scmp.lt.s32.totalorder %s19, 1
        %s200 = scalar_select %p199, %s19, 1
        %s201 = smul.addr %s200, 18
        %s202 = smul.addr %s201, 8
        %s203 = scalar_lea.vmem %s0, %s202
        %p204 = scmp.lt.s32.totalorder %s19, 1
        %s205 = scalar_select %p204, %s19, 1
        %s206 = smul.addr %s205, 4
        %s207 = smul.addr %s206, 8
        %s208 = scalar_lea.vmem %s4, %s207
        %v209 = vld [vmem:[%s203] sm:$0xff]
        %v210 = vld [vmem:[%s203 + $0x8] sm:$0xff]
        %v211 = vld [vmem:[%s203 + $0x10] sm:$0xff]
        %v212 = vld [vmem:[%s203 + $0x18] sm:$0xff]
        %v213 = vld [vmem:[%s203 + $0x20] sm:$0xff]
        %v214 = vld [vmem:[%s203 + $0x28] sm:$0xff]
        %v215 = vld [vmem:[%s203 + $0x30] sm:$0xff]
        %v216 = vld [vmem:[%s203 + $0x38] sm:$0xff]
        %v217 = vld [vmem:[%s203 + $0x40] sm:$0xff]
        %v218 = vld [vmem:[%s203 + $0x48] sm:$0xff]
        %v219 = vld [vmem:[%s203 + $0x50] sm:$0xff]
        %v220 = vld [vmem:[%s203 + $0x58] sm:$0xff]
        %v221 = vld [vmem:[%s203 + $0x60] sm:$0xff]
        %v222 = vld [vmem:[%s203 + $0x68] sm:$0xff]
        %v223 = vld [vmem:[%s203 + $0x70] sm:$0xff]
        %v224 = vld [vmem:[%s203 + $0x78] sm:$0xff]
        %v225 = vld [vmem:[%s203 + $0x80] sm:$0xff]
        %v226 = vld [vmem:[%s203 + $0x88] sm:$0xff]
        %v227 = vld [vmem:[%s1] sm:$0xff]
        %v228 = vld [vmem:[%s1 + $0x8] sm:$0xff]
        %v229 = vld [vmem:[%s1 + $0x10] sm:$0xff]
        %v230 = vld [vmem:[%s1 + $0x18] sm:$0xff]
        %v231 = vld [vmem:[%s1 + $0x20] sm:$0xff]
        %v232 = vld [vmem:[%s1 + $0x28] sm:$0xff]
        %v233 = vld [vmem:[%s1 + $0x30] sm:$0xff]
        %v234 = vld [vmem:[%s1 + $0x38] sm:$0xff]
        %v235 = vld [vmem:[%s2] sm:$0xff]
        %v236 = vld [vmem:[%s2 + $0x8] sm:$0xff]
        %v237 = vld [vmem:[%s2 + $0x10] sm:$0xff]
        %v238 = vld [vmem:[%s2 + $0x18] sm:$0xff]
        %240 = vset.pattern.permute.xlu0 0
        %241 = vperm.xlu0 %240, %v235
        %v242 = vpop.permute.xlu0 %241
        %245 = vset.pattern.permute.xlu0 0
        %246 = vperm.xlu0 %245, %v236
        %v247 = vpop.permute.xlu0 %246
        %250 = vset.pattern.permute.xlu0 0
        %251 = vperm.xlu0 %250, %v237
        %v252 = vpop.permute.xlu0 %251
        %255 = vset.pattern.permute.xlu0 0
        %256 = vperm.xlu0 %255, %v238
        %v257 = vpop.permute.xlu0 %256
        %vm259 = vcmask 130048
        %v261 = vsel %vm259, %v228, 0
        %v264 = vsel %vm259, %v230, 0
        %v267 = vsel %vm259, %v232, 0
        %v270 = vsel %vm259, %v234, 0
        %272 = vmatprep.subr.mxu0 0.0
        %273 = vmatpush1.msra.mxu0 %v224
        %274 = vmatprep.subr.mxu0 0.0
        %275 = vmatpush1.msra.mxu0 %v223
        %276 = vmatprep.subr.mxu0 0.0
        %277 = vmatpush1.msra.mxu0 %v222
        %278 = vmatprep.subr.mxu0 0.0
        %279 = vmatpush1.msra.mxu0 %v221
        %280 = vmatprep.subr.mxu0 0.0
        %281 = vmatpush1.msra.mxu0 %v220
        %282 = vmatprep.subr.mxu0 0.0
        %283 = vmatpush1.msra.mxu0 %v219
        %284 = vmatprep.subr.mxu0 0.0
        %285 = vmatpush1.msra.mxu0 %v218
        %286 = vmatprep.subr.mxu0 0.0
        %287 = vmatpush1.msra.mxu0 %v217
        %288 = vmatprep.subr.mxu0 0.0
        %289 = vmatpush1.msra.mxu0 %v216
        %290 = vmatprep.subr.mxu0 0.0
        %291 = vmatpush1.msra.mxu0 %v215
        %292 = vmatprep.subr.mxu0 0.0
        %293 = vmatpush1.msra.mxu0 %v214
        %294 = vmatprep.subr.mxu0 0.0
        %295 = vmatpush1.msra.mxu0 %v213
        %296 = vmatprep.subr.mxu0 0.0
        %297 = vmatpush1.msra.mxu0 %v212
        %298 = vmatprep.subr.mxu0 0.0
        %299 = vmatpush1.msra.mxu0 %v211
        %300 = vmatprep.subr.mxu0 0.0
        %301 = vmatpush1.msra.mxu0 %v210
        %302 = vmatprep.subr.mxu0 0.0
        %303 = vmatpush1.msra.mxu0 %v209
        %304 = vmatprep.subr.mxu0 0.0
        %305 = vmatpush2.msra.mxu0 0.0
        %306 = vmatprep.subr.mxu0 0.0
        %307 = vmatpush2.msra.mxu0 0.0
        %308 = vmatprep.subr.mxu0 0.0
        %309 = vmatpush2.msra.mxu0 0.0
        %310 = vmatprep.subr.mxu0 0.0
        %311 = vmatpush2.msra.mxu0 0.0
        %312 = vmatprep.subr.mxu0 0.0
        %313 = vmatpush2.msra.mxu0 0.0
        %314 = vmatprep.subr.mxu0 0.0
        %315 = vmatpush2.msra.mxu0 0.0
        %316 = vmatprep.subr.mxu0 0.0
        %317 = vmatpush2.msra.mxu0 0.0
        %318 = vmatprep.subr.mxu0 0.0
        %319 = vmatpush2.msra.mxu0 0.0
        %320 = vmatprep.subr.mxu0 0.0
        %321 = vmatpush2.msra.mxu0 0.0
        %322 = vmatprep.subr.mxu0 0.0
        %323 = vmatpush2.msra.mxu0 0.0
        %324 = vmatprep.subr.mxu0 0.0
        %325 = vmatpush2.msra.mxu0 0.0
        %326 = vmatprep.subr.mxu0 0.0
        %327 = vmatpush2.msra.mxu0 0.0
        %328 = vmatprep.subr.mxu0 0.0
        %329 = vmatpush2.msra.mxu0 0.0
        %330 = vmatprep.subr.mxu0 0.0
        %331 = vmatpush2.msra.mxu0 0.0
        %332 = vmatprep.subr.mxu0 0.0
        %333 = vmatpush2.msra.mxu0 %v226
        %334 = vmatprep.subr.mxu0 0.0
        %335 = vmatpush2.msra.mxu0 %v225
        %336 = vmatprep.mubr.f32.mxu0 %v261
        %337 = vmatmul.mubr.f32.gmra.mxu0 %v227
        %v338 = vpop.f32.mrf.mxu0
        %v339 = vadd.f32 %v242, %v338
        %v340 = vpop.f32.mrf.mxu0
        %341 = vmatprep.mubr.f32.mxu0 %v264
        %342 = vmatmul.mubr.f32.gmra.mxu0 %v229
        %v343 = vpop.f32.mrf.mxu0
        %v344 = vadd.f32 %v247, %v343
        %v345 = vpop.f32.mrf.mxu0
        %346 = vmatprep.mubr.f32.mxu0 %v267
        %347 = vmatmul.mubr.f32.gmra.mxu0 %v231
        %v348 = vpop.f32.mrf.mxu0
        %v349 = vadd.f32 %v252, %v348
        %v350 = vpop.f32.mrf.mxu0
        %351 = vmatprep.mubr.f32.mxu0 %v270
        %352 = vmatmul.mubr.f32.gmra.mxu0 %v233
        %v353 = vpop.f32.mrf.mxu0
        %v354 = vadd.f32 %v257, %v353
        %v355 = vpop.f32.mrf.mxu0
        %356 = vdwg.mxu0
        %v357 = vmax.f32 %v339, 0.0
        %v358 = vmax.f32 %v344, 0.0
        %v359 = vmax.f32 %v349, 0.0
        %v360 = vmax.f32 %v354, 0.0
        %361 = vst.msk [vmem:[%s191] sm:$0xff] %vm259, %v357
        %362 = vst.msk [vmem:[%s191 + $0x8] sm:$0xff] %vm259, %v358
        %363 = vst.msk [vmem:[%s191 + $0x10] sm:$0xff] %vm259, %v359
        %364 = vst.msk [vmem:[%s191 + $0x18] sm:$0xff] %vm259, %v360
        %v365 = vlaneseq
        %v366 = vand.u32 %v365, 127
        %vm367 = vcmp.lt.s32.totalorder %v366, 0
        %v368 = vsub.s32 0, %v366
        %v369 = vsel %vm367, %v368, %v366
        %v370 = vshrl.u32 %v369, 2
        %v371 = vand.u32 %v369, 3
        %v372 = vsub.s32 0, %v371
        %v373 = vsel %vm367, %v372, %v371
        %vm374 = vcmp.ne.s32.totalorder %v373, 0
        %vm375 = vcmp.lt.s32.totalorder %v373, 0
        %vm376 = vmand %vm375, %vm374
        %v377 = vadd.s32 %v373, 4
        %v378 = vsel %vm376, %v377, %v373
        %vm379 = vcmp.gt.s32.totalorder %v378, 0
        %vm380 = vcmp.lt.s32.totalorder %v378, 3
        %385 = vrot.lane.b32.xlu0 %v357, 5
        %v386 = vpop.permute.xlu0 %385
        %387 = vrot.lane.b32.xlu0 %v358, 5
        %v388 = vpop.permute.xlu0 %387
        %389 = vrot.lane.b32.xlu0 %v359, 5
        %v390 = vpop.permute.xlu0 %389
        %391 = vrot.lane.b32.xlu0 %v360, 5
        %v392 = vpop.permute.xlu0 %391
        %vm397 = vcmask 39936
        %v398 = vsel %vm397, 0.0, %v386
        %v399 = vsel %vm397, 0.0, %v388
        %v400 = vsel %vm397, 0.0, %v390
        %v401 = vsel %vm397, 0.0, %v392
        %v402 = vsel %vm379, %v398, 0.0
        %v403 = vsel %vm379, %v399, 0.0
        %v404 = vsel %vm379, %v400, 0.0
        %v405 = vsel %vm379, %v401, 0.0
        %406 = vrot.lane.b32.xlu0 %v357, 4
        %v407 = vpop.permute.xlu0 %406
        %408 = vrot.lane.b32.xlu0 %v358, 4
        %v409 = vpop.permute.xlu0 %408
        %410 = vrot.lane.b32.xlu0 %v359, 4
        %v411 = vpop.permute.xlu0 %410
        %412 = vrot.lane.b32.xlu0 %v360, 4
        %v413 = vpop.permute.xlu0 %412
        %vm418 = vcmask 31744
        %v419 = vsel %vm418, 0.0, %v407
        %v420 = vsel %vm418, 0.0, %v409
        %v421 = vsel %vm418, 0.0, %v411
        %v422 = vsel %vm418, 0.0, %v413
        %423 = vrot.lane.b32.xlu0 %v357, 3
        %v424 = vpop.permute.xlu0 %423
        %425 = vrot.lane.b32.xlu0 %v358, 3
        %v426 = vpop.permute.xlu0 %425
        %427 = vrot.lane.b32.xlu0 %v359, 3
        %v428 = vpop.permute.xlu0 %427
        %429 = vrot.lane.b32.xlu0 %v360, 3
        %v430 = vpop.permute.xlu0 %429
        %vm435 = vcmask 23552
        %v436 = vsel %vm435, 0.0, %v424
        %v437 = vsel %vm435, 0.0, %v426
        %v438 = vsel %vm435, 0.0, %v428
        %v439 = vsel %vm435, 0.0, %v430
        %v440 = vsel %vm380, %v436, 0.0
        %v441 = vsel %vm380, %v437, 0.0
        %v442 = vsel %vm380, %v438, 0.0
        %v443 = vsel %vm380, %v439, 0.0
        %444 = vrot.lane.b32.xlu0 %v357, 1
        %v445 = vpop.permute.xlu0 %444
        %446 = vrot.lane.b32.xlu0 %v358, 1
        %v447 = vpop.permute.xlu0 %446
        %448 = vrot.lane.b32.xlu0 %v359, 1
        %v449 = vpop.permute.xlu0 %448
        %450 = vrot.lane.b32.xlu0 %v360, 1
        %v451 = vpop.permute.xlu0 %450
        %vm456 = vcmask 7168
        %v457 = vsel %vm456, 0.0, %v445
        %v458 = vsel %vm456, 0.0, %v447
        %v459 = vsel %vm456, 0.0, %v449
        %v460 = vsel %vm456, 0.0, %v451
        %v461 = vsel %vm379, %v457, 0.0
        %v462 = vsel %vm379, %v458, 0.0
        %v463 = vsel %vm379, %v459, 0.0
        %v464 = vsel %vm379, %v460, 0.0
        %465 = vrot.lane.b32.xlu0 %v357, 127
        %v466 = vpop.permute.xlu0 %465
        %467 = vrot.lane.b32.xlu0 %v358, 127
        %v468 = vpop.permute.xlu0 %467
        %469 = vrot.lane.b32.xlu0 %v359, 127
        %v470 = vpop.permute.xlu0 %469
        %471 = vrot.lane.b32.xlu0 %v360, 127
        %v472 = vpop.permute.xlu0 %471
        %vm477 = vcmask 121856
        %v478 = vsel %vm477, %v466, 0.0
        %v479 = vsel %vm477, %v468, 0.0
        %v480 = vsel %vm477, %v470, 0.0
        %v481 = vsel %vm477, %v472, 0.0
        %v482 = vsel %vm380, %v478, 0.0
        %v483 = vsel %vm380, %v479, 0.0
        %v484 = vsel %vm380, %v480, 0.0
        %v485 = vsel %vm380, %v481, 0.0
        %486 = vrot.lane.b32.xlu0 %v357, 125
        %v487 = vpop.permute.xlu0 %486
        %488 = vrot.lane.b32.xlu0 %v358, 125
        %v489 = vpop.permute.xlu0 %488
        %490 = vrot.lane.b32.xlu0 %v359, 125
        %v491 = vpop.permute.xlu0 %490
        %492 = vrot.lane.b32.xlu0 %v360, 125
        %v493 = vpop.permute.xlu0 %492
        %vm498 = vcmask 105472
        %v499 = vsel %vm498, %v487, 0.0
        %v500 = vsel %vm498, %v489, 0.0
        %v501 = vsel %vm498, %v491, 0.0
        %v502 = vsel %vm498, %v493, 0.0
        %v503 = vsel %vm379, %v499, 0.0
        %v504 = vsel %vm379, %v500, 0.0
        %v505 = vsel %vm379, %v501, 0.0
        %v506 = vsel %vm379, %v502, 0.0
        %507 = vrot.lane.b32.xlu0 %v357, 124
        %v508 = vpop.permute.xlu0 %507
        %509 = vrot.lane.b32.xlu0 %v358, 124
        %v510 = vpop.permute.xlu0 %509
        %511 = vrot.lane.b32.xlu0 %v359, 124
        %v512 = vpop.permute.xlu0 %511
        %513 = vrot.lane.b32.xlu0 %v360, 124
        %v514 = vpop.permute.xlu0 %513
        %vm519 = vcmask 97280
        %v520 = vsel %vm519, %v508, 0.0
        %v521 = vsel %vm519, %v510, 0.0
        %v522 = vsel %vm519, %v512, 0.0
        %v523 = vsel %vm519, %v514, 0.0
        %524 = vrot.lane.b32.xlu0 %v357, 123
        %v525 = vpop.permute.xlu0 %524
        %526 = vrot.lane.b32.xlu0 %v358, 123
        %v527 = vpop.permute.xlu0 %526
        %528 = vrot.lane.b32.xlu0 %v359, 123
        %v529 = vpop.permute.xlu0 %528
        %530 = vrot.lane.b32.xlu0 %v360, 123
        %v531 = vpop.permute.xlu0 %530
        %vm536 = vcmask 89088
        %v537 = vsel %vm536, %v525, 0.0
        %v538 = vsel %vm536, %v527, 0.0
        %v539 = vsel %vm536, %v529, 0.0
        %v540 = vsel %vm536, %v531, 0.0
        %v541 = vsel %vm380, %v537, 0.0
        %v542 = vsel %vm380, %v538, 0.0
        %v543 = vsel %vm380, %v539, 0.0
        %v544 = vsel %vm380, %v540, 0.0
        %v545 = vadd.f32 %v402, 0.0
        %v546 = vadd.f32 %v403, 0.0
        %v547 = vadd.f32 %v404, 0.0
        %v548 = vadd.f32 %v405, 0.0
        %v549 = vadd.f32 %v545, %v419
        %v550 = vadd.f32 %v546, %v420
        %v551 = vadd.f32 %v547, %v421
        %v552 = vadd.f32 %v548, %v422
        %v553 = vadd.f32 %v549, %v440
        %v554 = vadd.f32 %v550, %v441
        %v555 = vadd.f32 %v551, %v442
        %v556 = vadd.f32 %v552, %v443
        %v557 = vadd.f32 %v553, %v461
        %v558 = vadd.f32 %v554, %v462
        %v559 = vadd.f32 %v555, %v463
        %v560 = vadd.f32 %v556, %v464
        %v561 = vadd.f32 %v557, %v357
        %v562 = vadd.f32 %v558, %v358
        %v563 = vadd.f32 %v559, %v359
        %v564 = vadd.f32 %v560, %v360
        %v565 = vadd.f32 %v561, %v482
        %v566 = vadd.f32 %v562, %v483
        %v567 = vadd.f32 %v563, %v484
        %v568 = vadd.f32 %v564, %v485
        %v569 = vadd.f32 %v565, %v503
        %v570 = vadd.f32 %v566, %v504
        %v571 = vadd.f32 %v567, %v505
        %v572 = vadd.f32 %v568, %v506
        %v573 = vadd.f32 %v569, %v520
        %v574 = vadd.f32 %v570, %v521
        %v575 = vadd.f32 %v571, %v522
        %v576 = vadd.f32 %v572, %v523
        %v577 = vadd.f32 %v573, %v541
        %v578 = vadd.f32 %v574, %v542
        %v579 = vadd.f32 %v575, %v543
        %v580 = vadd.f32 %v576, %v544
        %v581 = vmul.f32 %v577, 0.11111111
        %v582 = vmul.f32 %v578, 0.11111111
        %v583 = vmul.f32 %v579, 0.11111111
        %v584 = vmul.f32 %v580, 0.11111111
        %585 = vst.msk [vmem:[%s208] sm:$0xff] %vm259, %v581
        %586 = vst.msk [vmem:[%s208 + $0x8] sm:$0xff] %vm259, %v582
        %587 = vst.msk [vmem:[%s208 + $0x10] sm:$0xff] %vm259, %v583
        %588 = vst.msk [vmem:[%s208 + $0x18] sm:$0xff] %vm259, %v584
        %s589 = sand.u32 %s95, 1
        %s590 = scalar_lea.sflag [#allocation3], %s589
        %s591 = sand.u32 %s95, 1
        %s592 = smul.addr %s591, 32
        %s593 = scalar_lea.vmem [#allocation2], %s592
        %p594 = scmp.lt.s32.totalorder %s19, 1
        %s595 = scalar_select %p594, %s19, 1
        %s596 = smul.addr %s595, 4
        %s597 = smul.addr %s596, 8
        %s598 = scalar_lea.vmem %s4, %s597
        // Predicated region
        $region33: #{_forward_impl.7} parent=31 // pred_check
          %p599 = pneg %p105
        $region34: #{_forward_impl.7} parent=31 // pred_check_branch
          %601 = sbr.rel (%p599) target = $region36
        $region35: #{_forward_impl.7} parent=31 // pred_region
          %s603 = ssub.s32 512, 512
          %604 = vsyncadd %s590, %s603
          %s605 = smul.addr %s19, 4
          %s606 = smul.addr %s605, 128
          %s607 = scalar_lea.hbm %s3, %s606
          %s608 = sshll.u32 %s593, 4
          %s609 = int_to_ptr.vmem [resolvable:$true] %s608
          %614 = dma.vmem_to_hbm [thread:$0]  %s609, 512, %s607, %s590, 128, 128, 8
        $region36: #{_forward_impl.7} parent=31 // pred_fallthru
          _
        // Predicated region
        $region37: #{_forward_impl.7} parent=31 // pred_check
          %p615 = pneg %p131
        $region38: #{_forward_impl.7} parent=31 // pred_check_branch
          %617 = sbr.rel (%p615) target = $region40
        $region39: #{_forward_impl.7} parent=31 // pred_region
          _
        $region40: #{_forward_impl.7} parent=31 // pred_fallthru
          _
      $region32: #{_forward_impl.7} parent=5 // pred_fallthru
        _
      %p618 = scmp.le.s32.totalorder 2, %s14
      // Predicated region
      $region41: #{_forward_impl.7} parent=5 // pred_check
        %p619 = pneg %p618
      $region42: #{_forward_impl.7} parent=5 // pred_check_branch
        %621 = sbr.rel (%p619) target = $region44
      $region43: #{_forward_impl.7} parent=5 // pred_region
        %s622 = ssub.s32 %s14, 2
        // Predicated region
        $region45: #{_forward_impl.7} parent=43 // pred_check
          %p623 = pneg %p111
        $region46: #{_forward_impl.7} parent=43 // pred_check_branch
          %625 = sbr.rel (%p623) target = $region48
        $region47: #{_forward_impl.7} parent=43 // pred_region
          %s626 = sand.u32 %s96, 1
          %s627 = scalar_lea.sflag [#allocation3], %s626
          %s628 = sand.u32 %s96, 1
          %s629 = smul.addr %s628, 32
          %s630 = scalar_lea.vmem [#allocation2], %s629
          %631 = dma.done %s627, 512
        $region48: #{_forward_impl.7} parent=43 // pred_fallthru
          _
        // Predicated region
        $region49: #{_forward_impl.7} parent=43 // pred_check
          %p632 = pneg %p137
        $region50: #{_forward_impl.7} parent=43 // pred_check_branch
          %634 = sbr.rel (%p632) target = $region52
        $region51: #{_forward_impl.7} parent=43 // pred_region
          %p635 = scmp.lt.s32.totalorder %s20, 1
          %s636 = scalar_select %p635, %s20, 1
          %s637 = smul.addr %s636, 4
          %s638 = smul.addr %s637, 8
          %s639 = scalar_lea.vmem %s4, %s638
        $region52: #{_forward_impl.7} parent=43 // pred_fallthru
          _
      $region44: #{_forward_impl.7} parent=5 // pred_fallthru
        _
    $region6: #{_forward_impl.7} parent=1 // loop_footer
      %s18 = sadd.s32 1, %s14
    $region7: #{_forward_impl.7} parent=1 // loop_footer_branch
      %13 = sbr.rel target = $region3
    $region8: #{_forward_impl.7} parent=1 // loop_exit
      _
    %640 = vsyncpa [#allocation3], 1
    %s641 = scalar_lea.sflag [#allocation3], 1
    %642 = vsyncpa %s641, 1

</llo_original>
